<compile_context>
chip_gen: v5e
topology: v5e:2x2
jax: 0.10.0
libtpu: 0.0.40
codegen_flags: <defaults>
</compile_context>

<pallas_src>
import numpy as np
import jax
import jax.numpy as jnp
from jax.experimental import pallas as pl
from jax.experimental.pallas import tpu as pltpu


def make_kernel(k):
    """Mirror of the PyTorch make_kernel (deterministic, no params to load)."""
    k = np.asarray(k, dtype=np.float32)
    if k.ndim == 1:
        k = k[None, :] * k[:, None]
    k = k / k.sum()
    return k


def _separable_taps(k2, tol=1e-6):
    """If k2 is rank-1, return (row_taps, col_taps) with outer(row, col) == k2."""
    k2 = np.asarray(k2, dtype=np.float64)
    u, s, vt = np.linalg.svd(k2)
    if s[0] <= 0.0:
        return None
    if len(s) > 1 and s[1] > tol * s[0]:
        return None
    vtaps = u[:, 0] * np.sqrt(s[0])
    htaps = vt[0, :] * np.sqrt(s[0])
    if vtaps.sum() < 0:
        vtaps, htaps = -vtaps, -htaps
    if not np.allclose(np.outer(vtaps, htaps), k2, rtol=1e-5, atol=1e-7):
        return None
    return vtaps, htaps


def _round_up(v, m):
    return ((v + m - 1) // m) * m


def _vmem_policy():
    """Generation-aware VMEM budget (tile selection) + scoped limit for Mosaic."""
    cap = 64 * 1024 * 1024                       # conservative fallback (v7x: 64 MiB / TC)
    try:
        cap = int(getattr(pltpu.get_tpu_info(), "vmem_capacity_bytes", cap))
    except Exception:
        pass
    budget = min(int(cap * 0.6), 64 * 1024 * 1024)      # ~64 MiB on v5e/v6e, ~38 MiB on v7x
    limit = min(budget + (12 << 20), int(cap * 0.85))   # scoped limit handed to Mosaic
    return budget, max(int(limit), int(budget))


def _pick_tile_nc(ncp, per_lane_bytes, budget):
    """Largest 128*2^k tile of the lane (N*C) axis that fits the VMEM budget."""
    assert ncp % 128 == 0
    if 128 * per_lane_bytes > budget:
        # TODO(synk): in-kernel H tiling with a (kh-1)-row halo would remove this limit.
        raise ValueError("blur_pallas: a single 128-lane block exceeds the VMEM budget; "
                         "the H-chunking driver should have split the problem further.")
    tile = 128
    while (ncp % (tile * 2) == 0
           and (tile * 2) * per_lane_bytes <= budget
           # keep >=2 grid steps when possible so a v7x megacore split has work for
           # both TensorCores (cost on single-TC chips is only ~0.35us/step).
           and ncp // (tile * 2) >= 2):
        tile *= 2
    return tile


def _blur_single_call(x_cl, kflip, sep, ph0, ph1, pw0, pw1, budget, vmem_limit):
    """One pallas_call.  x_cl: (Hc, Wc, NC) channels-last; pads >= 0.  Returns (Ho, Wo, NC)."""
    Hc, Wc, NC = x_cl.shape
    kh, kw = kflip.shape
    Hp, Wp = Hc + ph0 + ph1, Wc + pw0 + pw1
    Ho, Wo = Hp - kh + 1, Wp - kw + 1
    assert Ho > 0 and Wo > 0, "output would be empty for this pad/kernel combo"

    need_pad = (ph0 > 0) or (ph1 > 0) or (pw0 > 0) or (pw1 > 0)

    if need_pad:
        wl = _round_up(pw0, 8)                 # sublane-aligned interior W offset
        Wpa = _round_up(wl + Wc + pw1, 8)      # multiple-of-8 padded width (roll/vst friendly)
    else:
        wl, Wpa = 0, Wc
    wr = Wpa - wl - Wc                          # right zero strip (real pad + alignment extra)
    hoff = wl - pw0                             # extra left-alignment columns

    # Pad N*C up to a multiple of 128: lanes stay dense (no masked partial stores).
    NCp = _round_up(NC, 128)
    if NCp != NC:
        x_cl = jnp.pad(x_cl, ((0, 0), (0, 0), (0, NCp - NC)))

    itemsize = np.dtype(x_cl.dtype).itemsize
    per_lane_bytes = (2 * Hc * Wc * itemsize                       # double-buffered input block
                      + 2 * Ho * Wo * itemsize                     # double-buffered output block
                      + (Hp * Wpa * itemsize if need_pad else 0)   # pad buffer (input dtype)
                      + 3 * Ho * Wpa * 4)                          # f32 temporaries (v, term, acc)
    tile_nc = _pick_tile_nc(NCp, per_lane_bytes, budget)
    n_blk = NCp // tile_nc

    # Block-major layout: block b occupies rows [b*Hc, (b+1)*Hc) -> one contiguous DMA per step.
    xt = (x_cl.reshape(Hc, Wc, n_blk, tile_nc)
              .transpose(2, 0, 1, 3)
              .reshape(n_blk * Hc, Wc, tile_nc))

    in_dtype = x_cl.dtype
    if sep is not None:
        vtaps, htaps = sep
    else:
        vtaps = htaps = None

    def blur_kernel(x_ref, o_ref, *scratch):
        if need_pad:
            (pbuf,) = scratch
            # Zero only the pad-border strips (exact cover, no full-plane memset).
            if ph0 > 0:
                pbuf[0:ph0, :, :] = jnp.zeros((ph0, Wpa, tile_nc), in_dtype)
            if ph1 > 0:
                pbuf[ph0 + Hc:, :, :] = jnp.zeros((ph1, Wpa, tile_nc), in_dtype)
            if wl > 0:
                pbuf[ph0:ph0 + Hc, 0:wl, :] = jnp.zeros((Hc, wl, tile_nc), in_dtype)
            if wr > 0:
                pbuf[ph0:ph0 + Hc, wl + Wc:, :] = jnp.zeros((Hc, wr, tile_nc), in_dtype)
            # Interior at a sublane-aligned W offset -> unmasked bulk store, input dtype.
            pbuf[ph0:ph0 + Hc, wl:wl + Wc, :] = x_ref[...]
            src, width, base, use_roll = pbuf, Wpa, hoff, True
        else:
            # No padding: read taps straight from the input block (no extra copy).
            src, width, base, use_roll = x_ref, Wc, 0, False

        if sep is not None:
            # Vertical 1-D pass (H offsets are free; full-width aligned loads).
            v = None
            for i in range(kh):
                c = float(vtaps[i])
                if c == 0.0:
                    continue
                t = src[i:i + Ho, :, :].astype(jnp.float32) * c
                v = t if v is None else v + t
            # Horizontal 1-D pass: sublane shifts via pltpu.roll (XLU) at full
            # width, then one aligned slice at the store (wrap columns land >= Wo).
            out = None
            for j in range(kw):
                c = float(htaps[j])
                if c == 0.0:
                    continue
                d = base + j
                if use_roll:
                    t = v if d == 0 else pltpu.roll(v, shift=(width - d) % width, axis=1)
                    t = t * c
                else:
                    t = v[:, d:d + Wo, :] * c
                out = t if out is None else out + t
            if use_roll:
                out = out[:, :Wo, :]
        else:
            # Non-separable fallback: full kh*kw 2-D tap unroll.
            out = None
            for i in range(kh):
                if all(float(kflip[i, j]) == 0.0 for j in range(kw)):
                    continue
                blk = src[i:i + Ho, :, :].astype(jnp.float32)
                for j in range(kw):
                    c = float(kflip[i, j])
                    if c == 0.0:
                        continue
                    t = blk[:, base + j:base + j + Wo, :] * c
                    out = t if out is None else out + t

        o_ref[...] = out.astype(o_ref.dtype)

    scratch_shapes = [pltpu.VMEM((Hp, Wpa, tile_nc), in_dtype)] if need_pad else []

    out_flat = pl.pallas_call(
        blur_kernel,
        out_shape=jax.ShapeDtypeStruct((n_blk * Ho, Wo, tile_nc), in_dtype),
        grid_spec=pltpu.PrefetchScalarGridSpec(
            num_scalar_prefetch=0,
            grid=(n_blk,),
            in_specs=[pl.BlockSpec((Hc, Wc, tile_nc), lambda b: (b, 0, 0))],
            out_specs=pl.BlockSpec((Ho, Wo, tile_nc), lambda b: (b, 0, 0)),
            scratch_shapes=scratch_shapes,
        ),
        compiler_params=pltpu.CompilerParams(
            dimension_semantics=("parallel",),
            vmem_limit_bytes=int(vmem_limit),
        ),
    )(xt)

    out_cl = (out_flat.reshape(n_blk, Ho, Wo, tile_nc)
                      .transpose(1, 2, 0, 3)
                      .reshape(Ho, Wo, NCp))
    return out_cl[:, :, :NC]


def _blur_channels_last(x_cl, kflip, sep, ph0, ph1, pw0, pw1):
    """Channels-last driver: splits big planes into output-row chunks so the VMEM slab fits."""
    Hc, Wc, NC = x_cl.shape
    kh, kw = kflip.shape
    Hp, Wp = Hc + ph0 + ph1, Wc + pw0 + pw1
    Ho, Wo = Hp - kh + 1, Wp - kw + 1
    assert Ho > 0 and Wo > 0, "output would be empty for this pad/kernel combo"

    budget, vmem_limit = _vmem_policy()
    itemsize = np.dtype(x_cl.dtype).itemsize
    wpa = _round_up(_round_up(pw0, 8) + Wc + pw1, 8)

    def per_lane(h_in, h_out):
        return (2 * h_in * Wc * itemsize + 2 * h_out * Wo * itemsize
                + (h_in + ph0 + ph1) * wpa * itemsize + 3 * h_out * wpa * 4)

    if 128 * per_lane(Hc, Ho) <= budget:
        return _blur_single_call(x_cl, kflip, sep, ph0, ph1, pw0, pw1, budget, vmem_limit)

    # Large plane: chunk output rows; each chunk re-reads a (kh-1)-row halo from HBM.
    th = Ho
    while th > 8 and 128 * per_lane(min(th + kh - 1, Hc), th) > budget:
        th = (th + 1) // 2
    outs = []
    for r0 in range(0, Ho, th):
        r1 = min(r0 + th, Ho)
        a = max(r0 - ph0, 0)
        b = min(r1 + kh - 1 - ph0, Hc)
        top = a + ph0 - r0
        bot = (r1 + kh - 1) - (b + ph0)
        outs.append(_blur_single_call(x_cl[a:b], kflip, sep, top, bot, pw0, pw1,
                                      budget, vmem_limit))
    return jnp.concatenate(outs, axis=0)


def blur_pallas(x, kernel_2d, pad, upsample_factor=1):
    """Equivalent of Blur.forward: upfirdn2d(x, kernel, up=1, down=1, pad=pad) for NCHW x."""
    N, C, H, W = x.shape
    k2 = np.asarray(kernel_2d, dtype=np.float32)
    if upsample_factor > 1:
        k2 = k2 * float(upsample_factor ** 2)
    pad0, pad1 = pad

    # Negative pads are crops -> cheap input slice; positive pads are fused into the kernel.
    c0, c1 = max(-pad0, 0), max(-pad1, 0)
    p0, p1 = max(pad0, 0), max(pad1, 0)
    if c0 or c1:
        x = x[:, :, c0:H - c1, c0:W - c1]
    Hc, Wc = H - c0 - c1, W - c0 - c1

    # F.conv2d(padded, flip(kernel)) == cross-correlation with the flipped kernel.
    kflip = np.ascontiguousarray(k2[::-1, ::-1]).astype(np.float64)
    sep = _separable_taps(kflip)

    # Channels-last so N*C sits on the 128-lane axis.  When this op is embedded in a
    # model that already carries channels-last activations, call _blur_channels_last
    # directly and skip the two wrapper transposes below.
    x_cl = jnp.transpose(x, (2, 3, 0, 1)).reshape(Hc, Wc, N * C)
    out_cl = _blur_channels_last(x_cl, kflip, sep, p0, p1, p0, p1)
    Ho, Wo = out_cl.shape[0], out_cl.shape[1]
    return jnp.transpose(out_cl.reshape(Ho, Wo, N, C), (2, 3, 0, 1))


def blur_reference(x, kernel_2d, pad, upsample_factor=1):
    """Pure-JAX reference (same math as upfirdn2d_native, no Pallas)."""
    N, C, H, W = x.shape
    k2 = np.asarray(kernel_2d, dtype=np.float32)
    if upsample_factor > 1:
        k2 = k2 * float(upsample_factor ** 2)
    kh, kw = k2.shape
    pad0, pad1 = pad
    xr = x.reshape(N * C, H, W).astype(jnp.float32)
    xp = jnp.pad(xr, ((0, 0),
                      (max(pad0, 0), max(pad1, 0)),
                      (max(pad0, 0), max(pad1, 0))))
    c0 = max(-pad0, 0)
    Hp = H + pad0 + pad1
    Wp = W + pad0 + pad1
    xp = xp[:, c0:c0 + Hp, c0:c0 + Wp]
    Ho, Wo = Hp - kh + 1, Wp - kw + 1
    kflip = k2[::-1, ::-1]
    acc = jnp.zeros((N * C, Ho, Wo), jnp.float32)
    for i in range(kh):
        for j in range(kw):
            acc = acc + float(kflip[i, j]) * xp[:, i:i + Ho, j:j + Wo]
    return acc.reshape(N, C, Ho, Wo).astype(x.dtype)


if __name__ == "__main__":
    # Blur([1, 3, 3, 1], pad=(2, 1)) — the standard discriminator configuration.
    blur_taps = make_kernel([1, 3, 3, 1])     # (4, 4), separable, sums to 1
    pad = (2, 1)

    key = jax.random.PRNGKey(0)
    x = jax.random.normal(key, (2, 4, 16, 16), dtype=jnp.float32)  # NCHW

    out = jax.block_until_ready(blur_pallas(x, blur_taps, pad))
    ref = blur_reference(x, blur_taps, pad)

    assert out.shape == (2, 4, 16, 16), out.shape
    np.testing.assert_allclose(np.asarray(out), np.asarray(ref), rtol=1e-5, atol=1e-5)

    print("KERNEL_OK")
</pallas_src>

<mosaic_0001>
module attributes {stable_mosaic.version = 11 : i64} {
  func.func @blur_kernel(%arg0: i32, %arg1: memref<16x16x128xf32, #tpu.memory_space<vmem>>, %arg2: memref<16x16x128xf32, #tpu.memory_space<vmem>>, %arg3: memref<19x32x128xf32, #tpu.memory_space<vmem>>) attributes {dimension_semantics = [#tpu.dimension_semantics<parallel>], iteration_bounds = array<i64: 1>, scalar_prefetch = 0 : i64, scratch_operands = 1 : i64, tpu.core_type = #tpu.core_type<tc>, window_params = [{transform_indices = @transform_0, window_bounds = array<i64: 16, 16, 128>}, {transform_indices = @transform_1, window_bounds = array<i64: 16, 16, 128>}]} {
    %cst = arith.constant 0.000000e+00 : f32
    %0 = vector.broadcast %cst : f32 to vector<2x32x128xf32>
    %c0 = arith.constant 0 : index
    %c0_0 = arith.constant 0 : index
    %c0_1 = arith.constant 0 : index
    %1 = vector.load %arg3[%c0, %c0_0, %c0_1] : memref<19x32x128xf32, #tpu.memory_space<vmem>>, vector<2x32x128xf32>
    tpu.vector_store %arg3[%c0, %c0_0, %c0_1], %0 {strides = array<i32>} : memref<19x32x128xf32, #tpu.memory_space<vmem>>, vector<2x32x128xf32>,
    %cst_2 = arith.constant 0.000000e+00 : f32
    %2 = vector.broadcast %cst_2 : f32 to vector<1x32x128xf32>
    %c18 = arith.constant 18 : index
    %c0_3 = arith.constant 0 : index
    %c0_4 = arith.constant 0 : index
    %3 = vector.load %arg3[%c18, %c0_3, %c0_4] : memref<19x32x128xf32, #tpu.memory_space<vmem>>, vector<1x32x128xf32>
    tpu.vector_store %arg3[%c18, %c0_3, %c0_4], %2 {strides = array<i32>} : memref<19x32x128xf32, #tpu.memory_space<vmem>>, vector<1x32x128xf32>,
    %cst_5 = arith.constant 0.000000e+00 : f32
    %4 = vector.broadcast %cst_5 : f32 to vector<16x8x128xf32>
    %c2 = arith.constant 2 : index
    %c0_6 = arith.constant 0 : index
    %c0_7 = arith.constant 0 : index
    %5 = vector.load %arg3[%c2, %c0_6, %c0_7] : memref<19x32x128xf32, #tpu.memory_space<vmem>>, vector<16x8x128xf32>
    tpu.vector_store %arg3[%c2, %c0_6, %c0_7], %4 {strides = array<i32>} : memref<19x32x128xf32, #tpu.memory_space<vmem>>, vector<16x8x128xf32>,
    %cst_8 = arith.constant 0.000000e+00 : f32
    %6 = vector.broadcast %cst_8 : f32 to vector<16x8x128xf32>
    %c2_9 = arith.constant 2 : index
    %c24 = arith.constant 24 : index
    %c0_10 = arith.constant 0 : index
    %7 = vector.load %arg3[%c2_9, %c24, %c0_10] : memref<19x32x128xf32, #tpu.memory_space<vmem>>, vector<16x8x128xf32>
    tpu.vector_store %arg3[%c2_9, %c24, %c0_10], %6 {strides = array<i32>} : memref<19x32x128xf32, #tpu.memory_space<vmem>>, vector<16x8x128xf32>,
    %c0_11 = arith.constant 0 : index
    %c0_12 = arith.constant 0 : index
    %c0_13 = arith.constant 0 : index
    %8 = vector.load %arg1[%c0_11, %c0_12, %c0_13] : memref<16x16x128xf32, #tpu.memory_space<vmem>>, vector<16x16x128xf32>
    %c2_14 = arith.constant 2 : index
    %c8 = arith.constant 8 : index
    %c0_15 = arith.constant 0 : index
    %9 = vector.load %arg3[%c2_14, %c8, %c0_15] : memref<19x32x128xf32, #tpu.memory_space<vmem>>, vector<16x16x128xf32>
    tpu.vector_store %arg3[%c2_14, %c8, %c0_15], %8 {strides = array<i32>} : memref<19x32x128xf32, #tpu.memory_space<vmem>>, vector<16x16x128xf32>,
    %c0_16 = arith.constant 0 : index
    %c0_17 = arith.constant 0 : index
    %c0_18 = arith.constant 0 : index
    %10 = vector.load %arg3[%c0_16, %c0_17, %c0_18] : memref<19x32x128xf32, #tpu.memory_space<vmem>>, vector<16x32x128xf32>
    %cst_19 = arith.constant 1.250000e-01 : f32
    %11 = vector.broadcast %cst_19 : f32 to vector<16x32x128xf32>
    %12 = arith.mulf %10, %11 : vector<16x32x128xf32>
    %c1 = arith.constant 1 : index
    %c0_20 = arith.constant 0 : index
    %c0_21 = arith.constant 0 : index
    %13 = vector.load %arg3[%c1, %c0_20, %c0_21] : memref<19x32x128xf32, #tpu.memory_space<vmem>>, vector<16x32x128xf32>
    %cst_22 = arith.constant 3.750000e-01 : f32
    %14 = vector.broadcast %cst_22 : f32 to vector<16x32x128xf32>
    %15 = arith.mulf %13, %14 : vector<16x32x128xf32>
    %16 = arith.addf %12, %15 : vector<16x32x128xf32>
    %c2_23 = arith.constant 2 : index
    %c0_24 = arith.constant 0 : index
    %c0_25 = arith.constant 0 : index
    %17 = vector.load %arg3[%c2_23, %c0_24, %c0_25] : memref<19x32x128xf32, #tpu.memory_space<vmem>>, vector<16x32x128xf32>
    %cst_26 = arith.constant 3.750000e-01 : f32
    %18 = vector.broadcast %cst_26 : f32 to vector<16x32x128xf32>
    %19 = arith.mulf %17, %18 : vector<16x32x128xf32>
    %20 = arith.addf %16, %19 : vector<16x32x128xf32>
    %c3 = arith.constant 3 : index
    %c0_27 = arith.constant 0 : index
    %c0_28 = arith.constant 0 : index
    %21 = vector.load %arg3[%c3, %c0_27, %c0_28] : memref<19x32x128xf32, #tpu.memory_space<vmem>>, vector<16x32x128xf32>
    %cst_29 = arith.constant 1.250000e-01 : f32
    %22 = vector.broadcast %cst_29 : f32 to vector<16x32x128xf32>
    %23 = arith.mulf %21, %22 : vector<16x32x128xf32>
    %24 = arith.addf %20, %23 : vector<16x32x128xf32>
    %c26_i32 = arith.constant 26 : i32
    %25 = tpu.dynamic_rotate %24 by %c26_i32 dim 1 : vector<16x32x128xf32>, i32 -> vector<16x32x128xf32>
    %cst_30 = arith.constant 1.250000e-01 : f32
    %26 = vector.broadcast %cst_30 : f32 to vector<16x32x128xf32>
    %27 = arith.mulf %25, %26 : vector<16x32x128xf32>
    %c25_i32 = arith.constant 25 : i32
    %28 = tpu.dynamic_rotate %24 by %c25_i32 dim 1 : vector<16x32x128xf32>, i32 -> vector<16x32x128xf32>
    %cst_31 = arith.constant 3.750000e-01 : f32
    %29 = vector.broadcast %cst_31 : f32 to vector<16x32x128xf32>
    %30 = arith.mulf %28, %29 : vector<16x32x128xf32>
    %31 = arith.addf %27, %30 : vector<16x32x128xf32>
    %c24_i32 = arith.constant 24 : i32
    %32 = tpu.dynamic_rotate %24 by %c24_i32 dim 1 : vector<16x32x128xf32>, i32 -> vector<16x32x128xf32>
    %cst_32 = arith.constant 3.750000e-01 : f32
    %33 = vector.broadcast %cst_32 : f32 to vector<16x32x128xf32>
    %34 = arith.mulf %32, %33 : vector<16x32x128xf32>
    %35 = arith.addf %31, %34 : vector<16x32x128xf32>
    %c23_i32 = arith.constant 23 : i32
    %36 = tpu.dynamic_rotate %24 by %c23_i32 dim 1 : vector<16x32x128xf32>, i32 -> vector<16x32x128xf32>
    %cst_33 = arith.constant 1.250000e-01 : f32
    %37 = vector.broadcast %cst_33 : f32 to vector<16x32x128xf32>
    %38 = arith.mulf %36, %37 : vector<16x32x128xf32>
    %39 = arith.addf %35, %38 : vector<16x32x128xf32>
    %40 = vector.extract_strided_slice %39 {offsets = [0, 0, 0], sizes = [16, 16, 128], strides = [1, 1, 1]} : vector<16x32x128xf32> to vector<16x16x128xf32>
    %c0_34 = arith.constant 0 : index
    %c0_35 = arith.constant 0 : index
    %c0_36 = arith.constant 0 : index
    %41 = vector.load %arg2[%c0_34, %c0_35, %c0_36] : memref<16x16x128xf32, #tpu.memory_space<vmem>>, vector<16x16x128xf32>
    tpu.vector_store %arg2[%c0_34, %c0_35, %c0_36], %40 {strides = array<i32>} : memref<16x16x128xf32, #tpu.memory_space<vmem>>, vector<16x16x128xf32>,
    return
  }
  func.func @transform_0(%arg0: i32) -> (i32, i32, i32) {
    %c0_i32 = arith.constant 0 : i32
    %c0_i32_0 = arith.constant 0 : i32
    %c0_i32_1 = arith.constant 0 : i32
    return %arg0, %c0_i32, %c0_i32_0 : i32, i32, i32
  }
  func.func @transform_1(%arg0: i32) -> (i32, i32, i32) {
    %c0_i32 = arith.constant 0 : i32
    %c0_i32_0 = arith.constant 0 : i32
    %c0_i32_1 = arith.constant 0 : i32
    return %arg0, %c0_i32, %c0_i32_0 : i32, i32, i32
  }
}

</mosaic_0001>

<llo_original>
// kernel: tpu_custom_call.1
$region0: #{tpu_custom_call.1}
  #allocation0 [shape = 'u32[]', space=smem, size = 0x4, offset = 0x4, fixed_abs, tag = 'smem constant byte address 0x4 - core index']
  #allocation1 [shape = 'u32[72,128]{1,0:T(1,128)}', space=vmem, size = 0x9000, scoped, tag = 'internal scratch']
  #allocation2 [shape = 'f32[19,32,128]{2,1,0:T(8,128)}', space=vmem, size = 0x4c000, scoped, tag = 'scratch operand']
  %s0 = inlined_call_operand.hbm [shape: f32[16,16,128], index: 0, kind: input, shape index: {}]
  %s1 = inlined_call_operand.hbm [shape: f32[16,16,128], index: 1, kind: output, shape index: {}]
  %s2 = sld [smem:[#allocation0]]
  $region18: #{tpu_custom_call.1} parent=0
    _
  %s4 = ssub.s32 1, %s2
  %s5 = scalar_select 0, %s4, %s2
  $region1: #{tpu_custom_call.1} parent=0
    #allocation3 [shape = 'u8[131072]{0}', space=vmem, size = 0x20000, scoped, tag = 'input window, operand 0, single buffered']
    #allocation4 [shape = 's32[1]{0}', space=sflag, size = 0x4, scoped, tag = 'scoped memory for tpu_custom_call.1']
    #allocation5 [shape = 's32[1]{0}', space=sflag, size = 0x4, scoped, tag = 'scoped memory for tpu_custom_call.1']
    #allocation6 [shape = 'u8[131072]{0}', space=vmem, size = 0x20000, scoped, tag = 'output window, operand 0, single buffered']
    %6 = vsyncpa [#allocation4], 0
    %7 = vsyncpa [#allocation5], 0
    // Predicated region
    $region2: #{tpu_custom_call.1} parent=1 // pred_check
      _
    $region3: #{tpu_custom_call.1} parent=1 // pred_check_branch
      %9 = sbr.rel (0) target = $region5
    $region4: #{tpu_custom_call.1} parent=1 // pred_region
      %11 = vsyncadd [#allocation4], 0
      %s12 = sshll.u32 %s0, 4
      %s13 = int_to_ptr.hbm [resolvable:$true] %s12
      %s14 = sshll.u32 [#allocation3], 4
      %s15 = int_to_ptr.vmem [resolvable:$true] %s14
      %20 = dma.hbm_to_vmem [thread:$0]  %s13, 4096, %s15, [#allocation4], 128, 128, 8
    $region5: #{tpu_custom_call.1} parent=1 // pred_fallthru
      _
    // Predicated region
    $region6: #{tpu_custom_call.1} parent=1 // pred_check
      _
    $region7: #{tpu_custom_call.1} parent=1 // pred_check_branch
      %22 = sbr.rel (0) target = $region9
    $region8: #{tpu_custom_call.1} parent=1 // pred_region
      %24 = dma.done [#allocation4], 4096
    $region9: #{tpu_custom_call.1} parent=1 // pred_fallthru
      _
    %25 = vst [vmem:[#allocation2] sm:$0xff] 0.0
    %26 = vst [vmem:[#allocation2 + $0x8] sm:$0xff] 0.0
    %27 = vst [vmem:[#allocation2 + $0x10] sm:$0xff] 0.0
    %28 = vst [vmem:[#allocation2 + $0x18] sm:$0xff] 0.0
    %29 = vst [vmem:[#allocation2 + $0x20] sm:$0xff] 0.0
    %30 = vst [vmem:[#allocation2 + $0x28] sm:$0xff] 0.0
    %31 = vst [vmem:[#allocation2 + $0x30] sm:$0xff] 0.0
    %32 = vst [vmem:[#allocation2 + $0x38] sm:$0xff] 0.0
    %s33 = scalar_lea.vmem [#allocation2], 576
    %34 = vst [vmem:[%s33] sm:$0xff] 0.0
    %35 = vst [vmem:[%s33 + $0x8] sm:$0xff] 0.0
    %36 = vst [vmem:[%s33 + $0x10] sm:$0xff] 0.0
    %37 = vst [vmem:[%s33 + $0x18] sm:$0xff] 0.0
    %s38 = scalar_lea.vmem [#allocation2], 64
    %39 = vst [vmem:[%s38] sm:$0xff] 0.0
    %40 = vst [vmem:[%s38 + $0x20] sm:$0xff] 0.0
    %41 = vst [vmem:[%s38 + $0x40] sm:$0xff] 0.0
    %42 = vst [vmem:[%s38 + $0x60] sm:$0xff] 0.0
    %43 = vst [vmem:[%s38 + $0x80] sm:$0xff] 0.0
    %44 = vst [vmem:[%s38 + $0xa0] sm:$0xff] 0.0
    %45 = vst [vmem:[%s38 + $0xc0] sm:$0xff] 0.0
    %46 = vst [vmem:[%s38 + $0xe0] sm:$0xff] 0.0
    %47 = vst [vmem:[%s38 + $0x100] sm:$0xff] 0.0
    %48 = vst [vmem:[%s38 + $0x120] sm:$0xff] 0.0
    %49 = vst [vmem:[%s38 + $0x140] sm:$0xff] 0.0
    %50 = vst [vmem:[%s38 + $0x160] sm:$0xff] 0.0
    %51 = vst [vmem:[%s38 + $0x180] sm:$0xff] 0.0
    %52 = vst [vmem:[%s38 + $0x1a0] sm:$0xff] 0.0
    %53 = vst [vmem:[%s38 + $0x1c0] sm:$0xff] 0.0
    %54 = vst [vmem:[%s38 + $0x1e0] sm:$0xff] 0.0
    %55 = vst [vmem:[%s38 + $0x18] sm:$0xff] 0.0
    %56 = vst [vmem:[%s38 + $0x38] sm:$0xff] 0.0
    %57 = vst [vmem:[%s38 + $0x58] sm:$0xff] 0.0
    %58 = vst [vmem:[%s38 + $0x78] sm:$0xff] 0.0
    %59 = vst [vmem:[%s38 + $0x98] sm:$0xff] 0.0
    %60 = vst [vmem:[%s38 + $0xb8] sm:$0xff] 0.0
    %61 = vst [vmem:[%s38 + $0xd8] sm:$0xff] 0.0
    %62 = vst [vmem:[%s38 + $0xf8] sm:$0xff] 0.0
    %63 = vst [vmem:[%s38 + $0x118] sm:$0xff] 0.0
    %64 = vst [vmem:[%s38 + $0x138] sm:$0xff] 0.0
    %65 = vst [vmem:[%s38 + $0x158] sm:$0xff] 0.0
    %66 = vst [vmem:[%s38 + $0x178] sm:$0xff] 0.0
    %67 = vst [vmem:[%s38 + $0x198] sm:$0xff] 0.0
    %68 = vst [vmem:[%s38 + $0x1b8] sm:$0xff] 0.0
    %69 = vst [vmem:[%s38 + $0x1d8] sm:$0xff] 0.0
    %70 = vst [vmem:[%s38 + $0x1f8] sm:$0xff] 0.0
    %v71 = vld [vmem:[#allocation3] sm:$0xff]
    %v72 = vld [vmem:[#allocation3 + $0x8] sm:$0xff]
    %v73 = vld [vmem:[#allocation3 + $0x10] sm:$0xff]
    %v74 = vld [vmem:[#allocation3 + $0x18] sm:$0xff]
    %v75 = vld [vmem:[#allocation3 + $0x20] sm:$0xff]
    %v76 = vld [vmem:[#allocation3 + $0x28] sm:$0xff]
    %v77 = vld [vmem:[#allocation3 + $0x30] sm:$0xff]
    %v78 = vld [vmem:[#allocation3 + $0x38] sm:$0xff]
    %v79 = vld [vmem:[#allocation3 + $0x40] sm:$0xff]
    %v80 = vld [vmem:[#allocation3 + $0x48] sm:$0xff]
    %v81 = vld [vmem:[#allocation3 + $0x50] sm:$0xff]
    %v82 = vld [vmem:[#allocation3 + $0x58] sm:$0xff]
    %v83 = vld [vmem:[#allocation3 + $0x60] sm:$0xff]
    %v84 = vld [vmem:[#allocation3 + $0x68] sm:$0xff]
    %v85 = vld [vmem:[#allocation3 + $0x70] sm:$0xff]
    %v86 = vld [vmem:[#allocation3 + $0x78] sm:$0xff]
    %v87 = vld [vmem:[#allocation3 + $0x80] sm:$0xff]
    %v88 = vld [vmem:[#allocation3 + $0x88] sm:$0xff]
    %v89 = vld [vmem:[#allocation3 + $0x90] sm:$0xff]
    %v90 = vld [vmem:[#allocation3 + $0x98] sm:$0xff]
    %v91 = vld [vmem:[#allocation3 + $0xa0] sm:$0xff]
    %v92 = vld [vmem:[#allocation3 + $0xa8] sm:$0xff]
    %v93 = vld [vmem:[#allocation3 + $0xb0] sm:$0xff]
    %v94 = vld [vmem:[#allocation3 + $0xb8] sm:$0xff]
    %v95 = vld [vmem:[#allocation3 + $0xc0] sm:$0xff]
    %v96 = vld [vmem:[#allocation3 + $0xc8] sm:$0xff]
    %v97 = vld [vmem:[#allocation3 + $0xd0] sm:$0xff]
    %v98 = vld [vmem:[#allocation3 + $0xd8] sm:$0xff]
    %v99 = vld [vmem:[#allocation3 + $0xe0] sm:$0xff]
    %v100 = vld [vmem:[#allocation3 + $0xe8] sm:$0xff]
    %v101 = vld [vmem:[#allocation3 + $0xf0] sm:$0xff]
    %v102 = vld [vmem:[#allocation3 + $0xf8] sm:$0xff]
    %103 = vst [vmem:[%s38 + $0x8] sm:$0xff] %v71
    %104 = vst [vmem:[%s38 + $0x10] sm:$0xff] %v72
    %105 = vst [vmem:[%s38 + $0x28] sm:$0xff] %v73
    %106 = vst [vmem:[%s38 + $0x30] sm:$0xff] %v74
    %107 = vst [vmem:[%s38 + $0x48] sm:$0xff] %v75
    %108 = vst [vmem:[%s38 + $0x50] sm:$0xff] %v76
    %109 = vst [vmem:[%s38 + $0x68] sm:$0xff] %v77
    %110 = vst [vmem:[%s38 + $0x70] sm:$0xff] %v78
    %111 = vst [vmem:[%s38 + $0x88] sm:$0xff] %v79
    %112 = vst [vmem:[%s38 + $0x90] sm:$0xff] %v80
    %113 = vst [vmem:[%s38 + $0xa8] sm:$0xff] %v81
    %114 = vst [vmem:[%s38 + $0xb0] sm:$0xff] %v82
    %115 = vst [vmem:[%s38 + $0xc8] sm:$0xff] %v83
    %116 = vst [vmem:[%s38 + $0xd0] sm:$0xff] %v84
    %117 = vst [vmem:[%s38 + $0xe8] sm:$0xff] %v85
    %118 = vst [vmem:[%s38 + $0xf0] sm:$0xff] %v86
    %119 = vst [vmem:[%s38 + $0x108] sm:$0xff] %v87
    %120 = vst [vmem:[%s38 + $0x110] sm:$0xff] %v88
    %121 = vst [vmem:[%s38 + $0x128] sm:$0xff] %v89
    %122 = vst [vmem:[%s38 + $0x130] sm:$0xff] %v90
    %123 = vst [vmem:[%s38 + $0x148] sm:$0xff] %v91
    %124 = vst [vmem:[%s38 + $0x150] sm:$0xff] %v92
    %125 = vst [vmem:[%s38 + $0x168] sm:$0xff] %v93
    %126 = vst [vmem:[%s38 + $0x170] sm:$0xff] %v94
    %127 = vst [vmem:[%s38 + $0x188] sm:$0xff] %v95
    %128 = vst [vmem:[%s38 + $0x190] sm:$0xff] %v96
    %129 = vst [vmem:[%s38 + $0x1a8] sm:$0xff] %v97
    %130 = vst [vmem:[%s38 + $0x1b0] sm:$0xff] %v98
    %131 = vst [vmem:[%s38 + $0x1c8] sm:$0xff] %v99
    %132 = vst [vmem:[%s38 + $0x1d0] sm:$0xff] %v100
    %133 = vst [vmem:[%s38 + $0x1e8] sm:$0xff] %v101
    %134 = vst [vmem:[%s38 + $0x1f0] sm:$0xff] %v102
    %v135 = vld [vmem:[#allocation2] sm:$0xff]
    %v136 = vld [vmem:[#allocation2 + $0x8] sm:$0xff]
    %v137 = vld [vmem:[#allocation2 + $0x10] sm:$0xff]
    %v138 = vld [vmem:[#allocation2 + $0x18] sm:$0xff]
    %v139 = vld [vmem:[#allocation2 + $0x20] sm:$0xff]
    %v140 = vld [vmem:[#allocation2 + $0x28] sm:$0xff]
    %v141 = vld [vmem:[#allocation2 + $0x30] sm:$0xff]
    %v142 = vld [vmem:[#allocation2 + $0x38] sm:$0xff]
    %v143 = vld [vmem:[#allocation2 + $0x40] sm:$0xff]
    %v144 = vld [vmem:[#allocation2 + $0x48] sm:$0xff]
    %v145 = vld [vmem:[#allocation2 + $0x50] sm:$0xff]
    %v146 = vld [vmem:[#allocation2 + $0x58] sm:$0xff]
    %v147 = vld [vmem:[#allocation2 + $0x60] sm:$0xff]
    %v148 = vld [vmem:[#allocation2 + $0x68] sm:$0xff]
    %v149 = vld [vmem:[#allocation2 + $0x70] sm:$0xff]
    %v150 = vld [vmem:[#allocation2 + $0x78] sm:$0xff]
    %v151 = vld [vmem:[#allocation2 + $0x80] sm:$0xff]
    %v152 = vld [vmem:[#allocation2 + $0x88] sm:$0xff]
    %v153 = vld [vmem:[#allocation2 + $0x90] sm:$0xff]
    %v154 = vld [vmem:[#allocation2 + $0x98] sm:$0xff]
    %v155 = vld [vmem:[#allocation2 + $0xa0] sm:$0xff]
    %v156 = vld [vmem:[#allocation2 + $0xa8] sm:$0xff]
    %v157 = vld [vmem:[#allocation2 + $0xb0] sm:$0xff]
    %v158 = vld [vmem:[#allocation2 + $0xb8] sm:$0xff]
    %v159 = vld [vmem:[#allocation2 + $0xc0] sm:$0xff]
    %v160 = vld [vmem:[#allocation2 + $0xc8] sm:$0xff]
    %v161 = vld [vmem:[#allocation2 + $0xd0] sm:$0xff]
    %v162 = vld [vmem:[#allocation2 + $0xd8] sm:$0xff]
    %v163 = vld [vmem:[#allocation2 + $0xe0] sm:$0xff]
    %v164 = vld [vmem:[#allocation2 + $0xe8] sm:$0xff]
    %v165 = vld [vmem:[#allocation2 + $0xf0] sm:$0xff]
    %v166 = vld [vmem:[#allocation2 + $0xf8] sm:$0xff]
    %v167 = vld [vmem:[#allocation2 + $0x100] sm:$0xff]
    %v168 = vld [vmem:[#allocation2 + $0x108] sm:$0xff]
    %v169 = vld [vmem:[#allocation2 + $0x110] sm:$0xff]
    %v170 = vld [vmem:[#allocation2 + $0x118] sm:$0xff]
    %v171 = vld [vmem:[#allocation2 + $0x120] sm:$0xff]
    %v172 = vld [vmem:[#allocation2 + $0x128] sm:$0xff]
    %v173 = vld [vmem:[#allocation2 + $0x130] sm:$0xff]
    %v174 = vld [vmem:[#allocation2 + $0x138] sm:$0xff]
    %v175 = vld [vmem:[#allocation2 + $0x140] sm:$0xff]
    %v176 = vld [vmem:[#allocation2 + $0x148] sm:$0xff]
    %v177 = vld [vmem:[#allocation2 + $0x150] sm:$0xff]
    %v178 = vld [vmem:[#allocation2 + $0x158] sm:$0xff]
    %v179 = vld [vmem:[#allocation2 + $0x160] sm:$0xff]
    %v180 = vld [vmem:[#allocation2 + $0x168] sm:$0xff]
    %v181 = vld [vmem:[#allocation2 + $0x170] sm:$0xff]
    %v182 = vld [vmem:[#allocation2 + $0x178] sm:$0xff]
    %v183 = vld [vmem:[#allocation2 + $0x180] sm:$0xff]
    %v184 = vld [vmem:[#allocation2 + $0x188] sm:$0xff]
    %v185 = vld [vmem:[#allocation2 + $0x190] sm:$0xff]
    %v186 = vld [vmem:[#allocation2 + $0x198] sm:$0xff]
    %v187 = vld [vmem:[#allocation2 + $0x1a0] sm:$0xff]
    %v188 = vld [vmem:[#allocation2 + $0x1a8] sm:$0xff]
    %v189 = vld [vmem:[#allocation2 + $0x1b0] sm:$0xff]
    %v190 = vld [vmem:[#allocation2 + $0x1b8] sm:$0xff]
    %v191 = vld [vmem:[#allocation2 + $0x1c0] sm:$0xff]
    %v192 = vld [vmem:[#allocation2 + $0x1c8] sm:$0xff]
    %v193 = vld [vmem:[#allocation2 + $0x1d0] sm:$0xff]
    %v194 = vld [vmem:[#allocation2 + $0x1d8] sm:$0xff]
    %v195 = vld [vmem:[#allocation2 + $0x1e0] sm:$0xff]
    %v196 = vld [vmem:[#allocation2 + $0x1e8] sm:$0xff]
    %v197 = vld [vmem:[#allocation2 + $0x1f0] sm:$0xff]
    %v198 = vld [vmem:[#allocation2 + $0x1f8] sm:$0xff]
    %v199 = vmul.f32 %v135, 0.125
    %v200 = vmul.f32 %v136, 0.125
    %v201 = vmul.f32 %v137, 0.125
    %v202 = vmul.f32 %v138, 0.125
    %v203 = vmul.f32 %v139, 0.125
    %v204 = vmul.f32 %v140, 0.125
    %v205 = vmul.f32 %v141, 0.125
    %v206 = vmul.f32 %v142, 0.125
    %v207 = vmul.f32 %v143, 0.125
    %v208 = vmul.f32 %v144, 0.125
    %v209 = vmul.f32 %v145, 0.125
    %v210 = vmul.f32 %v146, 0.125
    %v211 = vmul.f32 %v147, 0.125
    %v212 = vmul.f32 %v148, 0.125
    %v213 = vmul.f32 %v149, 0.125
    %v214 = vmul.f32 %v150, 0.125
    %v215 = vmul.f32 %v151, 0.125
    %v216 = vmul.f32 %v152, 0.125
    %v217 = vmul.f32 %v153, 0.125
    %v218 = vmul.f32 %v154, 0.125
    %v219 = vmul.f32 %v155, 0.125
    %v220 = vmul.f32 %v156, 0.125
    %v221 = vmul.f32 %v157, 0.125
    %v222 = vmul.f32 %v158, 0.125
    %v223 = vmul.f32 %v159, 0.125
    %v224 = vmul.f32 %v160, 0.125
    %v225 = vmul.f32 %v161, 0.125
    %v226 = vmul.f32 %v162, 0.125
    %v227 = vmul.f32 %v163, 0.125
    %v228 = vmul.f32 %v164, 0.125
    %v229 = vmul.f32 %v165, 0.125
    %v230 = vmul.f32 %v166, 0.125
    %v231 = vmul.f32 %v167, 0.125
    %v232 = vmul.f32 %v168, 0.125
    %v233 = vmul.f32 %v169, 0.125
    %v234 = vmul.f32 %v170, 0.125
    %v235 = vmul.f32 %v171, 0.125
    %v236 = vmul.f32 %v172, 0.125
    %v237 = vmul.f32 %v173, 0.125
    %v238 = vmul.f32 %v174, 0.125
    %v239 = vmul.f32 %v175, 0.125
    %v240 = vmul.f32 %v176, 0.125
    %v241 = vmul.f32 %v177, 0.125
    %v242 = vmul.f32 %v178, 0.125
    %v243 = vmul.f32 %v179, 0.125
    %v244 = vmul.f32 %v180, 0.125
    %v245 = vmul.f32 %v181, 0.125
    %v246 = vmul.f32 %v182, 0.125
    %v247 = vmul.f32 %v183, 0.125
    %v248 = vmul.f32 %v184, 0.125
    %v249 = vmul.f32 %v185, 0.125
    %v250 = vmul.f32 %v186, 0.125
    %v251 = vmul.f32 %v187, 0.125
    %v252 = vmul.f32 %v188, 0.125
    %v253 = vmul.f32 %v189, 0.125
    %v254 = vmul.f32 %v190, 0.125
    %v255 = vmul.f32 %v191, 0.125
    %v256 = vmul.f32 %v192, 0.125
    %v257 = vmul.f32 %v193, 0.125
    %v258 = vmul.f32 %v194, 0.125
    %v259 = vmul.f32 %v195, 0.125
    %v260 = vmul.f32 %v196, 0.125
    %v261 = vmul.f32 %v197, 0.125
    %v262 = vmul.f32 %v198, 0.125
    %s263 = scalar_lea.vmem [#allocation2], 32
    %v264 = vld [vmem:[%s263] sm:$0xff]
    %v265 = vld [vmem:[%s263 + $0x8] sm:$0xff]
    %v266 = vld [vmem:[%s263 + $0x10] sm:$0xff]
    %v267 = vld [vmem:[%s263 + $0x18] sm:$0xff]
    %v268 = vld [vmem:[%s263 + $0x20] sm:$0xff]
    %v269 = vld [vmem:[%s263 + $0x28] sm:$0xff]
    %v270 = vld [vmem:[%s263 + $0x30] sm:$0xff]
    %v271 = vld [vmem:[%s263 + $0x38] sm:$0xff]
    %v272 = vld [vmem:[%s263 + $0x40] sm:$0xff]
    %v273 = vld [vmem:[%s263 + $0x48] sm:$0xff]
    %v274 = vld [vmem:[%s263 + $0x50] sm:$0xff]
    %v275 = vld [vmem:[%s263 + $0x58] sm:$0xff]
    %v276 = vld [vmem:[%s263 + $0x60] sm:$0xff]
    %v277 = vld [vmem:[%s263 + $0x68] sm:$0xff]
    %v278 = vld [vmem:[%s263 + $0x70] sm:$0xff]
    %v279 = vld [vmem:[%s263 + $0x78] sm:$0xff]
    %v280 = vld [vmem:[%s263 + $0x80] sm:$0xff]
    %v281 = vld [vmem:[%s263 + $0x88] sm:$0xff]
    %v282 = vld [vmem:[%s263 + $0x90] sm:$0xff]
    %v283 = vld [vmem:[%s263 + $0x98] sm:$0xff]
    %v284 = vld [vmem:[%s263 + $0xa0] sm:$0xff]
    %v285 = vld [vmem:[%s263 + $0xa8] sm:$0xff]
    %v286 = vld [vmem:[%s263 + $0xb0] sm:$0xff]
    %v287 = vld [vmem:[%s263 + $0xb8] sm:$0xff]
    %v288 = vld [vmem:[%s263 + $0xc0] sm:$0xff]
    %v289 = vld [vmem:[%s263 + $0xc8] sm:$0xff]
    %v290 = vld [vmem:[%s263 + $0xd0] sm:$0xff]
    %v291 = vld [vmem:[%s263 + $0xd8] sm:$0xff]
    %v292 = vld [vmem:[%s263 + $0xe0] sm:$0xff]
    %v293 = vld [vmem:[%s263 + $0xe8] sm:$0xff]
    %v294 = vld [vmem:[%s263 + $0xf0] sm:$0xff]
    %v295 = vld [vmem:[%s263 + $0xf8] sm:$0xff]
    %v296 = vld [vmem:[%s263 + $0x100] sm:$0xff]
    %v297 = vld [vmem:[%s263 + $0x108] sm:$0xff]
    %v298 = vld [vmem:[%s263 + $0x110] sm:$0xff]
    %v299 = vld [vmem:[%s263 + $0x118] sm:$0xff]
    %v300 = vld [vmem:[%s263 + $0x120] sm:$0xff]
    %v301 = vld [vmem:[%s263 + $0x128] sm:$0xff]
    %v302 = vld [vmem:[%s263 + $0x130] sm:$0xff]
    %v303 = vld [vmem:[%s263 + $0x138] sm:$0xff]
    %v304 = vld [vmem:[%s263 + $0x140] sm:$0xff]
    %v305 = vld [vmem:[%s263 + $0x148] sm:$0xff]
    %v306 = vld [vmem:[%s263 + $0x150] sm:$0xff]
    %v307 = vld [vmem:[%s263 + $0x158] sm:$0xff]
    %v308 = vld [vmem:[%s263 + $0x160] sm:$0xff]
    %v309 = vld [vmem:[%s263 + $0x168] sm:$0xff]
    %v310 = vld [vmem:[%s263 + $0x170] sm:$0xff]
    %v311 = vld [vmem:[%s263 + $0x178] sm:$0xff]
    %v312 = vld [vmem:[%s263 + $0x180] sm:$0xff]
    %v313 = vld [vmem:[%s263 + $0x188] sm:$0xff]
    %v314 = vld [vmem:[%s263 + $0x190] sm:$0xff]
    %v315 = vld [vmem:[%s263 + $0x198] sm:$0xff]
    %v316 = vld [vmem:[%s263 + $0x1a0] sm:$0xff]
    %v317 = vld [vmem:[%s263 + $0x1a8] sm:$0xff]
    %v318 = vld [vmem:[%s263 + $0x1b0] sm:$0xff]
    %v319 = vld [vmem:[%s263 + $0x1b8] sm:$0xff]
    %v320 = vld [vmem:[%s263 + $0x1c0] sm:$0xff]
    %v321 = vld [vmem:[%s263 + $0x1c8] sm:$0xff]
    %v322 = vld [vmem:[%s263 + $0x1d0] sm:$0xff]
    %v323 = vld [vmem:[%s263 + $0x1d8] sm:$0xff]
    %v324 = vld [vmem:[%s263 + $0x1e0] sm:$0xff]
    %v325 = vld [vmem:[%s263 + $0x1e8] sm:$0xff]
    %v326 = vld [vmem:[%s263 + $0x1f0] sm:$0xff]
    %v327 = vld [vmem:[%s263 + $0x1f8] sm:$0xff]
    %v328 = vmul.f32 %v264, 0.375
    %v329 = vmul.f32 %v265, 0.375
    %v330 = vmul.f32 %v266, 0.375
    %v331 = vmul.f32 %v267, 0.375
    %v332 = vmul.f32 %v268, 0.375
    %v333 = vmul.f32 %v269, 0.375
    %v334 = vmul.f32 %v270, 0.375
    %v335 = vmul.f32 %v271, 0.375
    %v336 = vmul.f32 %v272, 0.375
    %v337 = vmul.f32 %v273, 0.375
    %v338 = vmul.f32 %v274, 0.375
    %v339 = vmul.f32 %v275, 0.375
    %v340 = vmul.f32 %v276, 0.375
    %v341 = vmul.f32 %v277, 0.375
    %v342 = vmul.f32 %v278, 0.375
    %v343 = vmul.f32 %v279, 0.375
    %v344 = vmul.f32 %v280, 0.375
    %v345 = vmul.f32 %v281, 0.375
    %v346 = vmul.f32 %v282, 0.375
    %v347 = vmul.f32 %v283, 0.375
    %v348 = vmul.f32 %v284, 0.375
    %v349 = vmul.f32 %v285, 0.375
    %v350 = vmul.f32 %v286, 0.375
    %v351 = vmul.f32 %v287, 0.375
    %v352 = vmul.f32 %v288, 0.375
    %v353 = vmul.f32 %v289, 0.375
    %v354 = vmul.f32 %v290, 0.375
    %v355 = vmul.f32 %v291, 0.375
    %v356 = vmul.f32 %v292, 0.375
    %v357 = vmul.f32 %v293, 0.375
    %v358 = vmul.f32 %v294, 0.375
    %v359 = vmul.f32 %v295, 0.375
    %v360 = vmul.f32 %v296, 0.375
    %v361 = vmul.f32 %v297, 0.375
    %v362 = vmul.f32 %v298, 0.375
    %v363 = vmul.f32 %v299, 0.375
    %v364 = vmul.f32 %v300, 0.375
    %v365 = vmul.f32 %v301, 0.375
    %v366 = vmul.f32 %v302, 0.375
    %v367 = vmul.f32 %v303, 0.375
    %v368 = vmul.f32 %v304, 0.375
    %v369 = vmul.f32 %v305, 0.375
    %v370 = vmul.f32 %v306, 0.375
    %v371 = vmul.f32 %v307, 0.375
    %v372 = vmul.f32 %v308, 0.375
    %v373 = vmul.f32 %v309, 0.375
    %v374 = vmul.f32 %v310, 0.375
    %v375 = vmul.f32 %v311, 0.375
    %v376 = vmul.f32 %v312, 0.375
    %v377 = vmul.f32 %v313, 0.375
    %v378 = vmul.f32 %v314, 0.375
    %v379 = vmul.f32 %v315, 0.375
    %v380 = vmul.f32 %v316, 0.375
    %v381 = vmul.f32 %v317, 0.375
    %v382 = vmul.f32 %v318, 0.375
    %v383 = vmul.f32 %v319, 0.375
    %v384 = vmul.f32 %v320, 0.375
    %v385 = vmul.f32 %v321, 0.375
    %v386 = vmul.f32 %v322, 0.375
    %v387 = vmul.f32 %v323, 0.375
    %v388 = vmul.f32 %v324, 0.375
    %v389 = vmul.f32 %v325, 0.375
    %v390 = vmul.f32 %v326, 0.375
    %v391 = vmul.f32 %v327, 0.375
    %v392 = vadd.f32 %v199, %v328
    %v393 = vadd.f32 %v200, %v329
    %v394 = vadd.f32 %v201, %v330
    %v395 = vadd.f32 %v202, %v331
    %v396 = vadd.f32 %v203, %v332
    %v397 = vadd.f32 %v204, %v333
    %v398 = vadd.f32 %v205, %v334
    %v399 = vadd.f32 %v206, %v335
    %v400 = vadd.f32 %v207, %v336
    %v401 = vadd.f32 %v208, %v337
    %v402 = vadd.f32 %v209, %v338
    %v403 = vadd.f32 %v210, %v339
    %v404 = vadd.f32 %v211, %v340
    %v405 = vadd.f32 %v212, %v341
    %v406 = vadd.f32 %v213, %v342
    %v407 = vadd.f32 %v214, %v343
    %v408 = vadd.f32 %v215, %v344
    %v409 = vadd.f32 %v216, %v345
    %v410 = vadd.f32 %v217, %v346
    %v411 = vadd.f32 %v218, %v347
    %v412 = vadd.f32 %v219, %v348
    %v413 = vadd.f32 %v220, %v349
    %v414 = vadd.f32 %v221, %v350
    %v415 = vadd.f32 %v222, %v351
    %v416 = vadd.f32 %v223, %v352
    %v417 = vadd.f32 %v224, %v353
    %v418 = vadd.f32 %v225, %v354
    %v419 = vadd.f32 %v226, %v355
    %v420 = vadd.f32 %v227, %v356
    %v421 = vadd.f32 %v228, %v357
    %v422 = vadd.f32 %v229, %v358
    %v423 = vadd.f32 %v230, %v359
    %v424 = vadd.f32 %v231, %v360
    %v425 = vadd.f32 %v232, %v361
    %v426 = vadd.f32 %v233, %v362
    %v427 = vadd.f32 %v234, %v363
    %v428 = vadd.f32 %v235, %v364
    %v429 = vadd.f32 %v236, %v365
    %v430 = vadd.f32 %v237, %v366
    %v431 = vadd.f32 %v238, %v367
    %v432 = vadd.f32 %v239, %v368
    %v433 = vadd.f32 %v240, %v369
    %v434 = vadd.f32 %v241, %v370
    %v435 = vadd.f32 %v242, %v371
    %v436 = vadd.f32 %v243, %v372
    %v437 = vadd.f32 %v244, %v373
    %v438 = vadd.f32 %v245, %v374
    %v439 = vadd.f32 %v246, %v375
    %v440 = vadd.f32 %v247, %v376
    %v441 = vadd.f32 %v248, %v377
    %v442 = vadd.f32 %v249, %v378
    %v443 = vadd.f32 %v250, %v379
    %v444 = vadd.f32 %v251, %v380
    %v445 = vadd.f32 %v252, %v381
    %v446 = vadd.f32 %v253, %v382
    %v447 = vadd.f32 %v254, %v383
    %v448 = vadd.f32 %v255, %v384
    %v449 = vadd.f32 %v256, %v385
    %v450 = vadd.f32 %v257, %v386
    %v451 = vadd.f32 %v258, %v387
    %v452 = vadd.f32 %v259, %v388
    %v453 = vadd.f32 %v260, %v389
    %v454 = vadd.f32 %v261, %v390
    %v455 = vadd.f32 %v262, %v391
    %v456 = vld [vmem:[%s38] sm:$0xff]
    %v457 = vld [vmem:[%s38 + $0x8] sm:$0xff]
    %v458 = vld [vmem:[%s38 + $0x10] sm:$0xff]
    %v459 = vld [vmem:[%s38 + $0x18] sm:$0xff]
    %v460 = vld [vmem:[%s38 + $0x20] sm:$0xff]
    %v461 = vld [vmem:[%s38 + $0x28] sm:$0xff]
    %v462 = vld [vmem:[%s38 + $0x30] sm:$0xff]
    %v463 = vld [vmem:[%s38 + $0x38] sm:$0xff]
    %v464 = vld [vmem:[%s38 + $0x40] sm:$0xff]
    %v465 = vld [vmem:[%s38 + $0x48] sm:$0xff]
    %v466 = vld [vmem:[%s38 + $0x50] sm:$0xff]
    %v467 = vld [vmem:[%s38 + $0x58] sm:$0xff]
    %v468 = vld [vmem:[%s38 + $0x60] sm:$0xff]
    %v469 = vld [vmem:[%s38 + $0x68] sm:$0xff]
    %v470 = vld [vmem:[%s38 + $0x70] sm:$0xff]
    %v471 = vld [vmem:[%s38 + $0x78] sm:$0xff]
    %v472 = vld [vmem:[%s38 + $0x80] sm:$0xff]
    %v473 = vld [vmem:[%s38 + $0x88] sm:$0xff]
    %v474 = vld [vmem:[%s38 + $0x90] sm:$0xff]
    %v475 = vld [vmem:[%s38 + $0x98] sm:$0xff]
    %v476 = vld [vmem:[%s38 + $0xa0] sm:$0xff]
    %v477 = vld [vmem:[%s38 + $0xa8] sm:$0xff]
    %v478 = vld [vmem:[%s38 + $0xb0] sm:$0xff]
    %v479 = vld [vmem:[%s38 + $0xb8] sm:$0xff]
    %v480 = vld [vmem:[%s38 + $0xc0] sm:$0xff]
    %v481 = vld [vmem:[%s38 + $0xc8] sm:$0xff]
    %v482 = vld [vmem:[%s38 + $0xd0] sm:$0xff]
    %v483 = vld [vmem:[%s38 + $0xd8] sm:$0xff]
    %v484 = vld [vmem:[%s38 + $0xe0] sm:$0xff]
    %v485 = vld [vmem:[%s38 + $0xe8] sm:$0xff]
    %v486 = vld [vmem:[%s38 + $0xf0] sm:$0xff]
    %v487 = vld [vmem:[%s38 + $0xf8] sm:$0xff]
    %v488 = vld [vmem:[%s38 + $0x100] sm:$0xff]
    %v489 = vld [vmem:[%s38 + $0x108] sm:$0xff]
    %v490 = vld [vmem:[%s38 + $0x110] sm:$0xff]
    %v491 = vld [vmem:[%s38 + $0x118] sm:$0xff]
    %v492 = vld [vmem:[%s38 + $0x120] sm:$0xff]
    %v493 = vld [vmem:[%s38 + $0x128] sm:$0xff]
    %v494 = vld [vmem:[%s38 + $0x130] sm:$0xff]
    %v495 = vld [vmem:[%s38 + $0x138] sm:$0xff]
    %v496 = vld [vmem:[%s38 + $0x140] sm:$0xff]
    %v497 = vld [vmem:[%s38 + $0x148] sm:$0xff]
    %v498 = vld [vmem:[%s38 + $0x150] sm:$0xff]
    %v499 = vld [vmem:[%s38 + $0x158] sm:$0xff]
    %v500 = vld [vmem:[%s38 + $0x160] sm:$0xff]
    %v501 = vld [vmem:[%s38 + $0x168] sm:$0xff]
    %v502 = vld [vmem:[%s38 + $0x170] sm:$0xff]
    %v503 = vld [vmem:[%s38 + $0x178] sm:$0xff]
    %v504 = vld [vmem:[%s38 + $0x180] sm:$0xff]
    %v505 = vld [vmem:[%s38 + $0x188] sm:$0xff]
    %v506 = vld [vmem:[%s38 + $0x190] sm:$0xff]
    %v507 = vld [vmem:[%s38 + $0x198] sm:$0xff]
    %v508 = vld [vmem:[%s38 + $0x1a0] sm:$0xff]
    %v509 = vld [vmem:[%s38 + $0x1a8] sm:$0xff]
    %v510 = vld [vmem:[%s38 + $0x1b0] sm:$0xff]
    %v511 = vld [vmem:[%s38 + $0x1b8] sm:$0xff]
    %v512 = vld [vmem:[%s38 + $0x1c0] sm:$0xff]
    %v513 = vld [vmem:[%s38 + $0x1c8] sm:$0xff]
    %v514 = vld [vmem:[%s38 + $0x1d0] sm:$0xff]
    %v515 = vld [vmem:[%s38 + $0x1d8] sm:$0xff]
    %v516 = vld [vmem:[%s38 + $0x1e0] sm:$0xff]
    %v517 = vld [vmem:[%s38 + $0x1e8] sm:$0xff]
    %v518 = vld [vmem:[%s38 + $0x1f0] sm:$0xff]
    %v519 = vld [vmem:[%s38 + $0x1f8] sm:$0xff]
    %v520 = vmul.f32 %v456, 0.375
    %v521 = vmul.f32 %v457, 0.375
    %v522 = vmul.f32 %v458, 0.375
    %v523 = vmul.f32 %v459, 0.375
    %v524 = vmul.f32 %v460, 0.375
    %v525 = vmul.f32 %v461, 0.375
    %v526 = vmul.f32 %v462, 0.375
    %v527 = vmul.f32 %v463, 0.375
    %v528 = vmul.f32 %v464, 0.375
    %v529 = vmul.f32 %v465, 0.375
    %v530 = vmul.f32 %v466, 0.375
    %v531 = vmul.f32 %v467, 0.375
    %v532 = vmul.f32 %v468, 0.375
    %v533 = vmul.f32 %v469, 0.375
    %v534 = vmul.f32 %v470, 0.375
    %v535 = vmul.f32 %v471, 0.375
    %v536 = vmul.f32 %v472, 0.375
    %v537 = vmul.f32 %v473, 0.375
    %v538 = vmul.f32 %v474, 0.375
    %v539 = vmul.f32 %v475, 0.375
    %v540 = vmul.f32 %v476, 0.375
    %v541 = vmul.f32 %v477, 0.375
    %v542 = vmul.f32 %v478, 0.375
    %v543 = vmul.f32 %v479, 0.375
    %v544 = vmul.f32 %v480, 0.375
    %v545 = vmul.f32 %v481, 0.375
    %v546 = vmul.f32 %v482, 0.375
    %v547 = vmul.f32 %v483, 0.375
    %v548 = vmul.f32 %v484, 0.375
    %v549 = vmul.f32 %v485, 0.375
    %v550 = vmul.f32 %v486, 0.375
    %v551 = vmul.f32 %v487, 0.375
    %v552 = vmul.f32 %v488, 0.375
    %v553 = vmul.f32 %v489, 0.375
    %v554 = vmul.f32 %v490, 0.375
    %v555 = vmul.f32 %v491, 0.375
    %v556 = vmul.f32 %v492, 0.375
    %v557 = vmul.f32 %v493, 0.375
    %v558 = vmul.f32 %v494, 0.375
    %v559 = vmul.f32 %v495, 0.375
    %v560 = vmul.f32 %v496, 0.375
    %v561 = vmul.f32 %v497, 0.375
    %v562 = vmul.f32 %v498, 0.375
    %v563 = vmul.f32 %v499, 0.375
    %v564 = vmul.f32 %v500, 0.375
    %v565 = vmul.f32 %v501, 0.375
    %v566 = vmul.f32 %v502, 0.375
    %v567 = vmul.f32 %v503, 0.375
    %v568 = vmul.f32 %v504, 0.375
    %v569 = vmul.f32 %v505, 0.375
    %v570 = vmul.f32 %v506, 0.375
    %v571 = vmul.f32 %v507, 0.375
    %v572 = vmul.f32 %v508, 0.375
    %v573 = vmul.f32 %v509, 0.375
    %v574 = vmul.f32 %v510, 0.375
    %v575 = vmul.f32 %v511, 0.375
    %v576 = vmul.f32 %v512, 0.375
    %v577 = vmul.f32 %v513, 0.375
    %v578 = vmul.f32 %v514, 0.375
    %v579 = vmul.f32 %v515, 0.375
    %v580 = vmul.f32 %v516, 0.375
    %v581 = vmul.f32 %v517, 0.375
    %v582 = vmul.f32 %v518, 0.375
    %v583 = vmul.f32 %v519, 0.375
    %v584 = vadd.f32 %v392, %v520
    %v585 = vadd.f32 %v393, %v521
    %v586 = vadd.f32 %v394, %v522
    %v587 = vadd.f32 %v395, %v523
    %v588 = vadd.f32 %v396, %v524
    %v589 = vadd.f32 %v397, %v525
    %v590 = vadd.f32 %v398, %v526
    %v591 = vadd.f32 %v399, %v527
    %v592 = vadd.f32 %v400, %v528
    %v593 = vadd.f32 %v401, %v529
    %v594 = vadd.f32 %v402, %v530
    %v595 = vadd.f32 %v403, %v531
    %v596 = vadd.f32 %v404, %v532
    %v597 = vadd.f32 %v405, %v533
    %v598 = vadd.f32 %v406, %v534
    %v599 = vadd.f32 %v407, %v535
    %v600 = vadd.f32 %v408, %v536
    %v601 = vadd.f32 %v409, %v537
    %v602 = vadd.f32 %v410, %v538
    %v603 = vadd.f32 %v411, %v539
    %v604 = vadd.f32 %v412, %v540
    %v605 = vadd.f32 %v413, %v541
    %v606 = vadd.f32 %v414, %v542
    %v607 = vadd.f32 %v415, %v543
    %v608 = vadd.f32 %v416, %v544
    %v609 = vadd.f32 %v417, %v545
    %v610 = vadd.f32 %v418, %v546
    %v611 = vadd.f32 %v419, %v547
    %v612 = vadd.f32 %v420, %v548
    %v613 = vadd.f32 %v421, %v549
    %v614 = vadd.f32 %v422, %v550
    %v615 = vadd.f32 %v423, %v551
    %v616 = vadd.f32 %v424, %v552
    %v617 = vadd.f32 %v425, %v553
    %v618 = vadd.f32 %v426, %v554
    %v619 = vadd.f32 %v427, %v555
    %v620 = vadd.f32 %v428, %v556
    %v621 = vadd.f32 %v429, %v557
    %v622 = vadd.f32 %v430, %v558
    %v623 = vadd.f32 %v431, %v559
    %v624 = vadd.f32 %v432, %v560
    %v625 = vadd.f32 %v433, %v561
    %v626 = vadd.f32 %v434, %v562
    %v627 = vadd.f32 %v435, %v563
    %v628 = vadd.f32 %v436, %v564
    %v629 = vadd.f32 %v437, %v565
    %v630 = vadd.f32 %v438, %v566
    %v631 = vadd.f32 %v439, %v567
    %v632 = vadd.f32 %v440, %v568
    %v633 = vadd.f32 %v441, %v569
    %v634 = vadd.f32 %v442, %v570
    %v635 = vadd.f32 %v443, %v571
    %v636 = vadd.f32 %v444, %v572
    %v637 = vadd.f32 %v445, %v573
    %v638 = vadd.f32 %v446, %v574
    %v639 = vadd.f32 %v447, %v575
    %v640 = vadd.f32 %v448, %v576
    %v641 = vadd.f32 %v449, %v577
    %v642 = vadd.f32 %v450, %v578
    %v643 = vadd.f32 %v451, %v579
    %v644 = vadd.f32 %v452, %v580
    %v645 = vadd.f32 %v453, %v581
    %v646 = vadd.f32 %v454, %v582
    %v647 = vadd.f32 %v455, %v583
    %s648 = scalar_lea.vmem [#allocation2], 96
    %v649 = vld [vmem:[%s648] sm:$0xff]
    %v650 = vld [vmem:[%s648 + $0x8] sm:$0xff]
    %v651 = vld [vmem:[%s648 + $0x10] sm:$0xff]
    %v652 = vld [vmem:[%s648 + $0x18] sm:$0xff]
    %v653 = vld [vmem:[%s648 + $0x20] sm:$0xff]
    %v654 = vld [vmem:[%s648 + $0x28] sm:$0xff]
    %v655 = vld [vmem:[%s648 + $0x30] sm:$0xff]
    %v656 = vld [vmem:[%s648 + $0x38] sm:$0xff]
    %v657 = vld [vmem:[%s648 + $0x40] sm:$0xff]
    %v658 = vld [vmem:[%s648 + $0x48] sm:$0xff]
    %v659 = vld [vmem:[%s648 + $0x50] sm:$0xff]
    %v660 = vld [vmem:[%s648 + $0x58] sm:$0xff]
    %v661 = vld [vmem:[%s648 + $0x60] sm:$0xff]
    %v662 = vld [vmem:[%s648 + $0x68] sm:$0xff]
    %v663 = vld [vmem:[%s648 + $0x70] sm:$0xff]
    %v664 = vld [vmem:[%s648 + $0x78] sm:$0xff]
    %v665 = vld [vmem:[%s648 + $0x80] sm:$0xff]
    %v666 = vld [vmem:[%s648 + $0x88] sm:$0xff]
    %v667 = vld [vmem:[%s648 + $0x90] sm:$0xff]
    %v668 = vld [vmem:[%s648 + $0x98] sm:$0xff]
    %v669 = vld [vmem:[%s648 + $0xa0] sm:$0xff]
    %v670 = vld [vmem:[%s648 + $0xa8] sm:$0xff]
    %v671 = vld [vmem:[%s648 + $0xb0] sm:$0xff]
    %v672 = vld [vmem:[%s648 + $0xb8] sm:$0xff]
    %v673 = vld [vmem:[%s648 + $0xc0] sm:$0xff]
    %v674 = vld [vmem:[%s648 + $0xc8] sm:$0xff]
    %v675 = vld [vmem:[%s648 + $0xd0] sm:$0xff]
    %v676 = vld [vmem:[%s648 + $0xd8] sm:$0xff]
    %v677 = vld [vmem:[%s648 + $0xe0] sm:$0xff]
    %v678 = vld [vmem:[%s648 + $0xe8] sm:$0xff]
    %v679 = vld [vmem:[%s648 + $0xf0] sm:$0xff]
    %v680 = vld [vmem:[%s648 + $0xf8] sm:$0xff]
    %v681 = vld [vmem:[%s648 + $0x100] sm:$0xff]
    %v682 = vld [vmem:[%s648 + $0x108] sm:$0xff]
    %v683 = vld [vmem:[%s648 + $0x110] sm:$0xff]
    %v684 = vld [vmem:[%s648 + $0x118] sm:$0xff]
    %v685 = vld [vmem:[%s648 + $0x120] sm:$0xff]
    %v686 = vld [vmem:[%s648 + $0x128] sm:$0xff]
    %v687 = vld [vmem:[%s648 + $0x130] sm:$0xff]
    %v688 = vld [vmem:[%s648 + $0x138] sm:$0xff]
    %v689 = vld [vmem:[%s648 + $0x140] sm:$0xff]
    %v690 = vld [vmem:[%s648 + $0x148] sm:$0xff]
    %v691 = vld [vmem:[%s648 + $0x150] sm:$0xff]
    %v692 = vld [vmem:[%s648 + $0x158] sm:$0xff]
    %v693 = vld [vmem:[%s648 + $0x160] sm:$0xff]
    %v694 = vld [vmem:[%s648 + $0x168] sm:$0xff]
    %v695 = vld [vmem:[%s648 + $0x170] sm:$0xff]
    %v696 = vld [vmem:[%s648 + $0x178] sm:$0xff]
    %v697 = vld [vmem:[%s648 + $0x180] sm:$0xff]
    %v698 = vld [vmem:[%s648 + $0x188] sm:$0xff]
    %v699 = vld [vmem:[%s648 + $0x190] sm:$0xff]
    %v700 = vld [vmem:[%s648 + $0x198] sm:$0xff]
    %v701 = vld [vmem:[%s648 + $0x1a0] sm:$0xff]
    %v702 = vld [vmem:[%s648 + $0x1a8] sm:$0xff]
    %v703 = vld [vmem:[%s648 + $0x1b0] sm:$0xff]
    %v704 = vld [vmem:[%s648 + $0x1b8] sm:$0xff]
    %v705 = vld [vmem:[%s648 + $0x1c0] sm:$0xff]
    %v706 = vld [vmem:[%s648 + $0x1c8] sm:$0xff]
    %v707 = vld [vmem:[%s648 + $0x1d0] sm:$0xff]
    %v708 = vld [vmem:[%s648 + $0x1d8] sm:$0xff]
    %v709 = vld [vmem:[%s648 + $0x1e0] sm:$0xff]
    %v710 = vld [vmem:[%s648 + $0x1e8] sm:$0xff]
    %v711 = vld [vmem:[%s648 + $0x1f0] sm:$0xff]
    %v712 = vld [vmem:[%s648 + $0x1f8] sm:$0xff]
    %v713 = vmul.f32 %v649, 0.125
    %v714 = vmul.f32 %v650, 0.125
    %v715 = vmul.f32 %v651, 0.125
    %v716 = vmul.f32 %v652, 0.125
    %v717 = vmul.f32 %v653, 0.125
    %v718 = vmul.f32 %v654, 0.125
    %v719 = vmul.f32 %v655, 0.125
    %v720 = vmul.f32 %v656, 0.125
    %v721 = vmul.f32 %v657, 0.125
    %v722 = vmul.f32 %v658, 0.125
    %v723 = vmul.f32 %v659, 0.125
    %v724 = vmul.f32 %v660, 0.125
    %v725 = vmul.f32 %v661, 0.125
    %v726 = vmul.f32 %v662, 0.125
    %v727 = vmul.f32 %v663, 0.125
    %v728 = vmul.f32 %v664, 0.125
    %v729 = vmul.f32 %v665, 0.125
    %v730 = vmul.f32 %v666, 0.125
    %v731 = vmul.f32 %v667, 0.125
    %v732 = vmul.f32 %v668, 0.125
    %v733 = vmul.f32 %v669, 0.125
    %v734 = vmul.f32 %v670, 0.125
    %v735 = vmul.f32 %v671, 0.125
    %v736 = vmul.f32 %v672, 0.125
    %v737 = vmul.f32 %v673, 0.125
    %v738 = vmul.f32 %v674, 0.125
    %v739 = vmul.f32 %v675, 0.125
    %v740 = vmul.f32 %v676, 0.125
    %v741 = vmul.f32 %v677, 0.125
    %v742 = vmul.f32 %v678, 0.125
    %v743 = vmul.f32 %v679, 0.125
    %v744 = vmul.f32 %v680, 0.125
    %v745 = vmul.f32 %v681, 0.125
    %v746 = vmul.f32 %v682, 0.125
    %v747 = vmul.f32 %v683, 0.125
    %v748 = vmul.f32 %v684, 0.125
    %v749 = vmul.f32 %v685, 0.125
    %v750 = vmul.f32 %v686, 0.125
    %v751 = vmul.f32 %v687, 0.125
    %v752 = vmul.f32 %v688, 0.125
    %v753 = vmul.f32 %v689, 0.125
    %v754 = vmul.f32 %v690, 0.125
    %v755 = vmul.f32 %v691, 0.125
    %v756 = vmul.f32 %v692, 0.125
    %v757 = vmul.f32 %v693, 0.125
    %v758 = vmul.f32 %v694, 0.125
    %v759 = vmul.f32 %v695, 0.125
    %v760 = vmul.f32 %v696, 0.125
    %v761 = vmul.f32 %v697, 0.125
    %v762 = vmul.f32 %v698, 0.125
    %v763 = vmul.f32 %v699, 0.125
    %v764 = vmul.f32 %v700, 0.125
    %v765 = vmul.f32 %v701, 0.125
    %v766 = vmul.f32 %v702, 0.125
    %v767 = vmul.f32 %v703, 0.125
    %v768 = vmul.f32 %v704, 0.125
    %v769 = vmul.f32 %v705, 0.125
    %v770 = vmul.f32 %v706, 0.125
    %v771 = vmul.f32 %v707, 0.125
    %v772 = vmul.f32 %v708, 0.125
    %v773 = vmul.f32 %v709, 0.125
    %v774 = vmul.f32 %v710, 0.125
    %v775 = vmul.f32 %v711, 0.125
    %v776 = vmul.f32 %v712, 0.125
    %v777 = vadd.f32 %v584, %v713
    %v778 = vadd.f32 %v585, %v714
    %v779 = vadd.f32 %v586, %v715
    %v780 = vadd.f32 %v587, %v716
    %v781 = vadd.f32 %v588, %v717
    %v782 = vadd.f32 %v589, %v718
    %v783 = vadd.f32 %v590, %v719
    %v784 = vadd.f32 %v591, %v720
    %v785 = vadd.f32 %v592, %v721
    %v786 = vadd.f32 %v593, %v722
    %v787 = vadd.f32 %v594, %v723
    %v788 = vadd.f32 %v595, %v724
    %v789 = vadd.f32 %v596, %v725
    %v790 = vadd.f32 %v597, %v726
    %v791 = vadd.f32 %v598, %v727
    %v792 = vadd.f32 %v599, %v728
    %v793 = vadd.f32 %v600, %v729
    %v794 = vadd.f32 %v601, %v730
    %v795 = vadd.f32 %v602, %v731
    %v796 = vadd.f32 %v603, %v732
    %v797 = vadd.f32 %v604, %v733
    %v798 = vadd.f32 %v605, %v734
    %v799 = vadd.f32 %v606, %v735
    %v800 = vadd.f32 %v607, %v736
    %v801 = vadd.f32 %v608, %v737
    %v802 = vadd.f32 %v609, %v738
    %v803 = vadd.f32 %v610, %v739
    %v804 = vadd.f32 %v611, %v740
    %v805 = vadd.f32 %v612, %v741
    %v806 = vadd.f32 %v613, %v742
    %v807 = vadd.f32 %v614, %v743
    %v808 = vadd.f32 %v615, %v744
    %v809 = vadd.f32 %v616, %v745
    %v810 = vadd.f32 %v617, %v746
    %v811 = vadd.f32 %v618, %v747
    %v812 = vadd.f32 %v619, %v748
    %v813 = vadd.f32 %v620, %v749
    %v814 = vadd.f32 %v621, %v750
    %v815 = vadd.f32 %v622, %v751
    %v816 = vadd.f32 %v623, %v752
    %v817 = vadd.f32 %v624, %v753
    %v818 = vadd.f32 %v625, %v754
    %v819 = vadd.f32 %v626, %v755
    %v820 = vadd.f32 %v627, %v756
    %v821 = vadd.f32 %v628, %v757
    %v822 = vadd.f32 %v629, %v758
    %v823 = vadd.f32 %v630, %v759
    %v824 = vadd.f32 %v631, %v760
    %v825 = vadd.f32 %v632, %v761
    %v826 = vadd.f32 %v633, %v762
    %v827 = vadd.f32 %v634, %v763
    %v828 = vadd.f32 %v635, %v764
    %v829 = vadd.f32 %v636, %v765
    %v830 = vadd.f32 %v637, %v766
    %v831 = vadd.f32 %v638, %v767
    %v832 = vadd.f32 %v639, %v768
    %v833 = vadd.f32 %v640, %v769
    %v834 = vadd.f32 %v641, %v770
    %v835 = vadd.f32 %v642, %v771
    %v836 = vadd.f32 %v643, %v772
    %v837 = vadd.f32 %v644, %v773
    %v838 = vadd.f32 %v645, %v774
    %v839 = vadd.f32 %v646, %v775
    %v840 = vadd.f32 %v647, %v776
    %v841 = vrot.slane %v777, 6
    %v842 = vrot.slane %v781, 6
    %v843 = vrot.slane %v785, 6
    %v844 = vrot.slane %v789, 6
    %v845 = vrot.slane %v793, 6
    %v846 = vrot.slane %v797, 6
    %v847 = vrot.slane %v801, 6
    %v848 = vrot.slane %v805, 6
    %v849 = vrot.slane %v809, 6
    %v850 = vrot.slane %v813, 6
    %v851 = vrot.slane %v817, 6
    %v852 = vrot.slane %v821, 6
    %v853 = vrot.slane %v825, 6
    %v854 = vrot.slane %v829, 6
    %v855 = vrot.slane %v833, 6
    %v856 = vrot.slane %v837, 6
    %v857 = vrot.slane %v778, 6
    %v858 = vrot.slane %v782, 6
    %v859 = vrot.slane %v786, 6
    %v860 = vrot.slane %v790, 6
    %v861 = vrot.slane %v794, 6
    %v862 = vrot.slane %v798, 6
    %v863 = vrot.slane %v802, 6
    %v864 = vrot.slane %v806, 6
    %v865 = vrot.slane %v810, 6
    %v866 = vrot.slane %v814, 6
    %v867 = vrot.slane %v818, 6
    %v868 = vrot.slane %v822, 6
    %v869 = vrot.slane %v826, 6
    %v870 = vrot.slane %v830, 6
    %v871 = vrot.slane %v834, 6
    %v872 = vrot.slane %v838, 6
    %v873 = vrot.slane %v779, 6
    %v874 = vrot.slane %v783, 6
    %v875 = vrot.slane %v787, 6
    %v876 = vrot.slane %v791, 6
    %v877 = vrot.slane %v795, 6
    %v878 = vrot.slane %v799, 6
    %v879 = vrot.slane %v803, 6
    %v880 = vrot.slane %v807, 6
    %v881 = vrot.slane %v811, 6
    %v882 = vrot.slane %v815, 6
    %v883 = vrot.slane %v819, 6
    %v884 = vrot.slane %v823, 6
    %v885 = vrot.slane %v827, 6
    %v886 = vrot.slane %v831, 6
    %v887 = vrot.slane %v835, 6
    %v888 = vrot.slane %v839, 6
    %v889 = vlaneseq
    %v890 = vshrl.u32 %v889, 7
    %vm891 = vcmp.lt.s32.totalorder %v890, 2
    %v892 = vsel %vm891, %v857, %v873
    %v893 = vsel %vm891, %v858, %v874
    %v894 = vsel %vm891, %v859, %v875
    %v895 = vsel %vm891, %v860, %v876
    %v896 = vsel %vm891, %v861, %v877
    %v897 = vsel %vm891, %v862, %v878
    %v898 = vsel %vm891, %v863, %v879
    %v899 = vsel %vm891, %v864, %v880
    %v900 = vsel %vm891, %v865, %v881
    %v901 = vsel %vm891, %v866, %v882
    %v902 = vsel %vm891, %v867, %v883
    %v903 = vsel %vm891, %v868, %v884
    %v904 = vsel %vm891, %v869, %v885
    %v905 = vsel %vm891, %v870, %v886
    %v906 = vsel %vm891, %v871, %v887
    %v907 = vsel %vm891, %v872, %v888
    %v908 = vsel %vm891, %v841, %v857
    %v909 = vsel %vm891, %v842, %v858
    %v910 = vsel %vm891, %v843, %v859
    %v911 = vsel %vm891, %v844, %v860
    %v912 = vsel %vm891, %v845, %v861
    %v913 = vsel %vm891, %v846, %v862
    %v914 = vsel %vm891, %v847, %v863
    %v915 = vsel %vm891, %v848, %v864
    %v916 = vsel %vm891, %v849, %v865
    %v917 = vsel %vm891, %v850, %v866
    %v918 = vsel %vm891, %v851, %v867
    %v919 = vsel %vm891, %v852, %v868
    %v920 = vsel %vm891, %v853, %v869
    %v921 = vsel %vm891, %v854, %v870
    %v922 = vsel %vm891, %v855, %v871
    %v923 = vsel %vm891, %v856, %v872
    %v924 = vmul.f32 %v908, 0.125
    %v925 = vmul.f32 %v892, 0.125
    %v926 = vmul.f32 %v909, 0.125
    %v927 = vmul.f32 %v893, 0.125
    %v928 = vmul.f32 %v910, 0.125
    %v929 = vmul.f32 %v894, 0.125
    %v930 = vmul.f32 %v911, 0.125
    %v931 = vmul.f32 %v895, 0.125
    %v932 = vmul.f32 %v912, 0.125
    %v933 = vmul.f32 %v896, 0.125
    %v934 = vmul.f32 %v913, 0.125
    %v935 = vmul.f32 %v897, 0.125
    %v936 = vmul.f32 %v914, 0.125
    %v937 = vmul.f32 %v898, 0.125
    %v938 = vmul.f32 %v915, 0.125
    %v939 = vmul.f32 %v899, 0.125
    %v940 = vmul.f32 %v916, 0.125
    %v941 = vmul.f32 %v900, 0.125
    %v942 = vmul.f32 %v917, 0.125
    %v943 = vmul.f32 %v901, 0.125
    %v944 = vmul.f32 %v918, 0.125
    %v945 = vmul.f32 %v902, 0.125
    %v946 = vmul.f32 %v919, 0.125
    %v947 = vmul.f32 %v903, 0.125
    %v948 = vmul.f32 %v920, 0.125
    %v949 = vmul.f32 %v904, 0.125
    %v950 = vmul.f32 %v921, 0.125
    %v951 = vmul.f32 %v905, 0.125
    %v952 = vmul.f32 %v922, 0.125
    %v953 = vmul.f32 %v906, 0.125
    %v954 = vmul.f32 %v923, 0.125
    %v955 = vmul.f32 %v907, 0.125
    %v956 = vrot.slane %v777, 7
    %v957 = vrot.slane %v781, 7
    %v958 = vrot.slane %v785, 7
    %v959 = vrot.slane %v789, 7
    %v960 = vrot.slane %v793, 7
    %v961 = vrot.slane %v797, 7
    %v962 = vrot.slane %v801, 7
    %v963 = vrot.slane %v805, 7
    %v964 = vrot.slane %v809, 7
    %v965 = vrot.slane %v813, 7
    %v966 = vrot.slane %v817, 7
    %v967 = vrot.slane %v821, 7
    %v968 = vrot.slane %v825, 7
    %v969 = vrot.slane %v829, 7
    %v970 = vrot.slane %v833, 7
    %v971 = vrot.slane %v837, 7
    %v972 = vrot.slane %v778, 7
    %v973 = vrot.slane %v782, 7
    %v974 = vrot.slane %v786, 7
    %v975 = vrot.slane %v790, 7
    %v976 = vrot.slane %v794, 7
    %v977 = vrot.slane %v798, 7
    %v978 = vrot.slane %v802, 7
    %v979 = vrot.slane %v806, 7
    %v980 = vrot.slane %v810, 7
    %v981 = vrot.slane %v814, 7
    %v982 = vrot.slane %v818, 7
    %v983 = vrot.slane %v822, 7
    %v984 = vrot.slane %v826, 7
    %v985 = vrot.slane %v830, 7
    %v986 = vrot.slane %v834, 7
    %v987 = vrot.slane %v838, 7
    %v988 = vrot.slane %v779, 7
    %v989 = vrot.slane %v783, 7
    %v990 = vrot.slane %v787, 7
    %v991 = vrot.slane %v791, 7
    %v992 = vrot.slane %v795, 7
    %v993 = vrot.slane %v799, 7
    %v994 = vrot.slane %v803, 7
    %v995 = vrot.slane %v807, 7
    %v996 = vrot.slane %v811, 7
    %v997 = vrot.slane %v815, 7
    %v998 = vrot.slane %v819, 7
    %v999 = vrot.slane %v823, 7
    %v1000 = vrot.slane %v827, 7
    %v1001 = vrot.slane %v831, 7
    %v1002 = vrot.slane %v835, 7
    %v1003 = vrot.slane %v839, 7
    %vm1004 = vcmp.lt.s32.totalorder %v890, 1
    %v1005 = vsel %vm1004, %v972, %v988
    %v1006 = vsel %vm1004, %v973, %v989
    %v1007 = vsel %vm1004, %v974, %v990
    %v1008 = vsel %vm1004, %v975, %v991
    %v1009 = vsel %vm1004, %v976, %v992
    %v1010 = vsel %vm1004, %v977, %v993
    %v1011 = vsel %vm1004, %v978, %v994
    %v1012 = vsel %vm1004, %v979, %v995
    %v1013 = vsel %vm1004, %v980, %v996
    %v1014 = vsel %vm1004, %v981, %v997
    %v1015 = vsel %vm1004, %v982, %v998
    %v1016 = vsel %vm1004, %v983, %v999
    %v1017 = vsel %vm1004, %v984, %v1000
    %v1018 = vsel %vm1004, %v985, %v1001
    %v1019 = vsel %vm1004, %v986, %v1002
    %v1020 = vsel %vm1004, %v987, %v1003
    %v1021 = vsel %vm1004, %v956, %v972
    %v1022 = vsel %vm1004, %v957, %v973
    %v1023 = vsel %vm1004, %v958, %v974
    %v1024 = vsel %vm1004, %v959, %v975
    %v1025 = vsel %vm1004, %v960, %v976
    %v1026 = vsel %vm1004, %v961, %v977
    %v1027 = vsel %vm1004, %v962, %v978
    %v1028 = vsel %vm1004, %v963, %v979
    %v1029 = vsel %vm1004, %v964, %v980
    %v1030 = vsel %vm1004, %v965, %v981
    %v1031 = vsel %vm1004, %v966, %v982
    %v1032 = vsel %vm1004, %v967, %v983
    %v1033 = vsel %vm1004, %v968, %v984
    %v1034 = vsel %vm1004, %v969, %v985
    %v1035 = vsel %vm1004, %v970, %v986
    %v1036 = vsel %vm1004, %v971, %v987
    %v1037 = vmul.f32 %v1021, 0.375
    %v1038 = vmul.f32 %v1005, 0.375
    %v1039 = vmul.f32 %v1022, 0.375
    %v1040 = vmul.f32 %v1006, 0.375
    %v1041 = vmul.f32 %v1023, 0.375
    %v1042 = vmul.f32 %v1007, 0.375
    %v1043 = vmul.f32 %v1024, 0.375
    %v1044 = vmul.f32 %v1008, 0.375
    %v1045 = vmul.f32 %v1025, 0.375
    %v1046 = vmul.f32 %v1009, 0.375
    %v1047 = vmul.f32 %v1026, 0.375
    %v1048 = vmul.f32 %v1010, 0.375
    %v1049 = vmul.f32 %v1027, 0.375
    %v1050 = vmul.f32 %v1011, 0.375
    %v1051 = vmul.f32 %v1028, 0.375
    %v1052 = vmul.f32 %v1012, 0.375
    %v1053 = vmul.f32 %v1029, 0.375
    %v1054 = vmul.f32 %v1013, 0.375
    %v1055 = vmul.f32 %v1030, 0.375
    %v1056 = vmul.f32 %v1014, 0.375
    %v1057 = vmul.f32 %v1031, 0.375
    %v1058 = vmul.f32 %v1015, 0.375
    %v1059 = vmul.f32 %v1032, 0.375
    %v1060 = vmul.f32 %v1016, 0.375
    %v1061 = vmul.f32 %v1033, 0.375
    %v1062 = vmul.f32 %v1017, 0.375
    %v1063 = vmul.f32 %v1034, 0.375
    %v1064 = vmul.f32 %v1018, 0.375
    %v1065 = vmul.f32 %v1035, 0.375
    %v1066 = vmul.f32 %v1019, 0.375
    %v1067 = vmul.f32 %v1036, 0.375
    %v1068 = vmul.f32 %v1020, 0.375
    %v1069 = vadd.f32 %v924, %v1037
    %v1070 = vadd.f32 %v925, %v1038
    %v1071 = vadd.f32 %v926, %v1039
    %v1072 = vadd.f32 %v927, %v1040
    %v1073 = vadd.f32 %v928, %v1041
    %v1074 = vadd.f32 %v929, %v1042
    %v1075 = vadd.f32 %v930, %v1043
    %v1076 = vadd.f32 %v931, %v1044
    %v1077 = vadd.f32 %v932, %v1045
    %v1078 = vadd.f32 %v933, %v1046
    %v1079 = vadd.f32 %v934, %v1047
    %v1080 = vadd.f32 %v935, %v1048
    %v1081 = vadd.f32 %v936, %v1049
    %v1082 = vadd.f32 %v937, %v1050
    %v1083 = vadd.f32 %v938, %v1051
    %v1084 = vadd.f32 %v939, %v1052
    %v1085 = vadd.f32 %v940, %v1053
    %v1086 = vadd.f32 %v941, %v1054
    %v1087 = vadd.f32 %v942, %v1055
    %v1088 = vadd.f32 %v943, %v1056
    %v1089 = vadd.f32 %v944, %v1057
    %v1090 = vadd.f32 %v945, %v1058
    %v1091 = vadd.f32 %v946, %v1059
    %v1092 = vadd.f32 %v947, %v1060
    %v1093 = vadd.f32 %v948, %v1061
    %v1094 = vadd.f32 %v949, %v1062
    %v1095 = vadd.f32 %v950, %v1063
    %v1096 = vadd.f32 %v951, %v1064
    %v1097 = vadd.f32 %v952, %v1065
    %v1098 = vadd.f32 %v953, %v1066
    %v1099 = vadd.f32 %v954, %v1067
    %v1100 = vadd.f32 %v955, %v1068
    %v1101 = vmul.f32 %v778, 0.375
    %v1102 = vmul.f32 %v779, 0.375
    %v1103 = vmul.f32 %v782, 0.375
    %v1104 = vmul.f32 %v783, 0.375
    %v1105 = vmul.f32 %v786, 0.375
    %v1106 = vmul.f32 %v787, 0.375
    %v1107 = vmul.f32 %v790, 0.375
    %v1108 = vmul.f32 %v791, 0.375
    %v1109 = vmul.f32 %v794, 0.375
    %v1110 = vmul.f32 %v795, 0.375
    %v1111 = vmul.f32 %v798, 0.375
    %v1112 = vmul.f32 %v799, 0.375
    %v1113 = vmul.f32 %v802, 0.375
    %v1114 = vmul.f32 %v803, 0.375
    %v1115 = vmul.f32 %v806, 0.375
    %v1116 = vmul.f32 %v807, 0.375
    %v1117 = vmul.f32 %v810, 0.375
    %v1118 = vmul.f32 %v811, 0.375
    %v1119 = vmul.f32 %v814, 0.375
    %v1120 = vmul.f32 %v815, 0.375
    %v1121 = vmul.f32 %v818, 0.375
    %v1122 = vmul.f32 %v819, 0.375
    %v1123 = vmul.f32 %v822, 0.375
    %v1124 = vmul.f32 %v823, 0.375
    %v1125 = vmul.f32 %v826, 0.375
    %v1126 = vmul.f32 %v827, 0.375
    %v1127 = vmul.f32 %v830, 0.375
    %v1128 = vmul.f32 %v831, 0.375
    %v1129 = vmul.f32 %v834, 0.375
    %v1130 = vmul.f32 %v835, 0.375
    %v1131 = vmul.f32 %v838, 0.375
    %v1132 = vmul.f32 %v839, 0.375
    %v1133 = vadd.f32 %v1069, %v1101
    %v1134 = vadd.f32 %v1070, %v1102
    %v1135 = vadd.f32 %v1071, %v1103
    %v1136 = vadd.f32 %v1072, %v1104
    %v1137 = vadd.f32 %v1073, %v1105
    %v1138 = vadd.f32 %v1074, %v1106
    %v1139 = vadd.f32 %v1075, %v1107
    %v1140 = vadd.f32 %v1076, %v1108
    %v1141 = vadd.f32 %v1077, %v1109
    %v1142 = vadd.f32 %v1078, %v1110
    %v1143 = vadd.f32 %v1079, %v1111
    %v1144 = vadd.f32 %v1080, %v1112
    %v1145 = vadd.f32 %v1081, %v1113
    %v1146 = vadd.f32 %v1082, %v1114
    %v1147 = vadd.f32 %v1083, %v1115
    %v1148 = vadd.f32 %v1084, %v1116
    %v1149 = vadd.f32 %v1085, %v1117
    %v1150 = vadd.f32 %v1086, %v1118
    %v1151 = vadd.f32 %v1087, %v1119
    %v1152 = vadd.f32 %v1088, %v1120
    %v1153 = vadd.f32 %v1089, %v1121
    %v1154 = vadd.f32 %v1090, %v1122
    %v1155 = vadd.f32 %v1091, %v1123
    %v1156 = vadd.f32 %v1092, %v1124
    %v1157 = vadd.f32 %v1093, %v1125
    %v1158 = vadd.f32 %v1094, %v1126
    %v1159 = vadd.f32 %v1095, %v1127
    %v1160 = vadd.f32 %v1096, %v1128
    %v1161 = vadd.f32 %v1097, %v1129
    %v1162 = vadd.f32 %v1098, %v1130
    %v1163 = vadd.f32 %v1099, %v1131
    %v1164 = vadd.f32 %v1100, %v1132
    %v1165 = vrot.slane %v778, 1
    %v1166 = vrot.slane %v782, 1
    %v1167 = vrot.slane %v786, 1
    %v1168 = vrot.slane %v790, 1
    %v1169 = vrot.slane %v794, 1
    %v1170 = vrot.slane %v798, 1
    %v1171 = vrot.slane %v802, 1
    %v1172 = vrot.slane %v806, 1
    %v1173 = vrot.slane %v810, 1
    %v1174 = vrot.slane %v814, 1
    %v1175 = vrot.slane %v818, 1
    %v1176 = vrot.slane %v822, 1
    %v1177 = vrot.slane %v826, 1
    %v1178 = vrot.slane %v830, 1
    %v1179 = vrot.slane %v834, 1
    %v1180 = vrot.slane %v838, 1
    %v1181 = vrot.slane %v779, 1
    %v1182 = vrot.slane %v783, 1
    %v1183 = vrot.slane %v787, 1
    %v1184 = vrot.slane %v791, 1
    %v1185 = vrot.slane %v795, 1
    %v1186 = vrot.slane %v799, 1
    %v1187 = vrot.slane %v803, 1
    %v1188 = vrot.slane %v807, 1
    %v1189 = vrot.slane %v811, 1
    %v1190 = vrot.slane %v815, 1
    %v1191 = vrot.slane %v819, 1
    %v1192 = vrot.slane %v823, 1
    %v1193 = vrot.slane %v827, 1
    %v1194 = vrot.slane %v831, 1
    %v1195 = vrot.slane %v835, 1
    %v1196 = vrot.slane %v839, 1
    %v1197 = vrot.slane %v780, 1
    %v1198 = vrot.slane %v784, 1
    %v1199 = vrot.slane %v788, 1
    %v1200 = vrot.slane %v792, 1
    %v1201 = vrot.slane %v796, 1
    %v1202 = vrot.slane %v800, 1
    %v1203 = vrot.slane %v804, 1
    %v1204 = vrot.slane %v808, 1
    %v1205 = vrot.slane %v812, 1
    %v1206 = vrot.slane %v816, 1
    %v1207 = vrot.slane %v820, 1
    %v1208 = vrot.slane %v824, 1
    %v1209 = vrot.slane %v828, 1
    %v1210 = vrot.slane %v832, 1
    %v1211 = vrot.slane %v836, 1
    %v1212 = vrot.slane %v840, 1
    %vm1213 = vcmp.lt.s32.totalorder %v890, 7
    %v1214 = vsel %vm1213, %v1181, %v1197
    %v1215 = vsel %vm1213, %v1182, %v1198
    %v1216 = vsel %vm1213, %v1183, %v1199
    %v1217 = vsel %vm1213, %v1184, %v1200
    %v1218 = vsel %vm1213, %v1185, %v1201
    %v1219 = vsel %vm1213, %v1186, %v1202
    %v1220 = vsel %vm1213, %v1187, %v1203
    %v1221 = vsel %vm1213, %v1188, %v1204
    %v1222 = vsel %vm1213, %v1189, %v1205
    %v1223 = vsel %vm1213, %v1190, %v1206
    %v1224 = vsel %vm1213, %v1191, %v1207
    %v1225 = vsel %vm1213, %v1192, %v1208
    %v1226 = vsel %vm1213, %v1193, %v1209
    %v1227 = vsel %vm1213, %v1194, %v1210
    %v1228 = vsel %vm1213, %v1195, %v1211
    %v1229 = vsel %vm1213, %v1196, %v1212
    %v1230 = vsel %vm1213, %v1165, %v1181
    %v1231 = vsel %vm1213, %v1166, %v1182
    %v1232 = vsel %vm1213, %v1167, %v1183
    %v1233 = vsel %vm1213, %v1168, %v1184
    %v1234 = vsel %vm1213, %v1169, %v1185
    %v1235 = vsel %vm1213, %v1170, %v1186
    %v1236 = vsel %vm1213, %v1171, %v1187
    %v1237 = vsel %vm1213, %v1172, %v1188
    %v1238 = vsel %vm1213, %v1173, %v1189
    %v1239 = vsel %vm1213, %v1174, %v1190
    %v1240 = vsel %vm1213, %v1175, %v1191
    %v1241 = vsel %vm1213, %v1176, %v1192
    %v1242 = vsel %vm1213, %v1177, %v1193
    %v1243 = vsel %vm1213, %v1178, %v1194
    %v1244 = vsel %vm1213, %v1179, %v1195
    %v1245 = vsel %vm1213, %v1180, %v1196
    %v1246 = vmul.f32 %v1230, 0.125
    %v1247 = vmul.f32 %v1214, 0.125
    %v1248 = vmul.f32 %v1231, 0.125
    %v1249 = vmul.f32 %v1215, 0.125
    %v1250 = vmul.f32 %v1232, 0.125
    %v1251 = vmul.f32 %v1216, 0.125
    %v1252 = vmul.f32 %v1233, 0.125
    %v1253 = vmul.f32 %v1217, 0.125
    %v1254 = vmul.f32 %v1234, 0.125
    %v1255 = vmul.f32 %v1218, 0.125
    %v1256 = vmul.f32 %v1235, 0.125
    %v1257 = vmul.f32 %v1219, 0.125
    %v1258 = vmul.f32 %v1236, 0.125
    %v1259 = vmul.f32 %v1220, 0.125
    %v1260 = vmul.f32 %v1237, 0.125
    %v1261 = vmul.f32 %v1221, 0.125
    %v1262 = vmul.f32 %v1238, 0.125
    %v1263 = vmul.f32 %v1222, 0.125
    %v1264 = vmul.f32 %v1239, 0.125
    %v1265 = vmul.f32 %v1223, 0.125
    %v1266 = vmul.f32 %v1240, 0.125
    %v1267 = vmul.f32 %v1224, 0.125
    %v1268 = vmul.f32 %v1241, 0.125
    %v1269 = vmul.f32 %v1225, 0.125
    %v1270 = vmul.f32 %v1242, 0.125
    %v1271 = vmul.f32 %v1226, 0.125
    %v1272 = vmul.f32 %v1243, 0.125
    %v1273 = vmul.f32 %v1227, 0.125
    %v1274 = vmul.f32 %v1244, 0.125
    %v1275 = vmul.f32 %v1228, 0.125
    %v1276 = vmul.f32 %v1245, 0.125
    %v1277 = vmul.f32 %v1229, 0.125
    %v1278 = vadd.f32 %v1133, %v1246
    %v1279 = vadd.f32 %v1134, %v1247
    %v1280 = vadd.f32 %v1135, %v1248
    %v1281 = vadd.f32 %v1136, %v1249
    %v1282 = vadd.f32 %v1137, %v1250
    %v1283 = vadd.f32 %v1138, %v1251
    %v1284 = vadd.f32 %v1139, %v1252
    %v1285 = vadd.f32 %v1140, %v1253
    %v1286 = vadd.f32 %v1141, %v1254
    %v1287 = vadd.f32 %v1142, %v1255
    %v1288 = vadd.f32 %v1143, %v1256
    %v1289 = vadd.f32 %v1144, %v1257
    %v1290 = vadd.f32 %v1145, %v1258
    %v1291 = vadd.f32 %v1146, %v1259
    %v1292 = vadd.f32 %v1147, %v1260
    %v1293 = vadd.f32 %v1148, %v1261
    %v1294 = vadd.f32 %v1149, %v1262
    %v1295 = vadd.f32 %v1150, %v1263
    %v1296 = vadd.f32 %v1151, %v1264
    %v1297 = vadd.f32 %v1152, %v1265
    %v1298 = vadd.f32 %v1153, %v1266
    %v1299 = vadd.f32 %v1154, %v1267
    %v1300 = vadd.f32 %v1155, %v1268
    %v1301 = vadd.f32 %v1156, %v1269
    %v1302 = vadd.f32 %v1157, %v1270
    %v1303 = vadd.f32 %v1158, %v1271
    %v1304 = vadd.f32 %v1159, %v1272
    %v1305 = vadd.f32 %v1160, %v1273
    %v1306 = vadd.f32 %v1161, %v1274
    %v1307 = vadd.f32 %v1162, %v1275
    %v1308 = vadd.f32 %v1163, %v1276
    %v1309 = vadd.f32 %v1164, %v1277
    %1310 = vst [vmem:[#allocation6] sm:$0xff] %v1278
    %1311 = vst [vmem:[#allocation6 + $0x8] sm:$0xff] %v1279
    %1312 = vst [vmem:[#allocation6 + $0x10] sm:$0xff] %v1280
    %1313 = vst [vmem:[#allocation6 + $0x18] sm:$0xff] %v1281
    %1314 = vst [vmem:[#allocation6 + $0x20] sm:$0xff] %v1282
    %1315 = vst [vmem:[#allocation6 + $0x28] sm:$0xff] %v1283
    %1316 = vst [vmem:[#allocation6 + $0x30] sm:$0xff] %v1284
    %1317 = vst [vmem:[#allocation6 + $0x38] sm:$0xff] %v1285
    %1318 = vst [vmem:[#allocation6 + $0x40] sm:$0xff] %v1286
    %1319 = vst [vmem:[#allocation6 + $0x48] sm:$0xff] %v1287
    %1320 = vst [vmem:[#allocation6 + $0x50] sm:$0xff] %v1288
    %1321 = vst [vmem:[#allocation6 + $0x58] sm:$0xff] %v1289
    %1322 = vst [vmem:[#allocation6 + $0x60] sm:$0xff] %v1290
    %1323 = vst [vmem:[#allocation6 + $0x68] sm:$0xff] %v1291
    %1324 = vst [vmem:[#allocation6 + $0x70] sm:$0xff] %v1292
    %1325 = vst [vmem:[#allocation6 + $0x78] sm:$0xff] %v1293
    %1326 = vst [vmem:[#allocation6 + $0x80] sm:$0xff] %v1294
    %1327 = vst [vmem:[#allocation6 + $0x88] sm:$0xff] %v1295
    %1328 = vst [vmem:[#allocation6 + $0x90] sm:$0xff] %v1296
    %1329 = vst [vmem:[#allocation6 + $0x98] sm:$0xff] %v1297
    %1330 = vst [vmem:[#allocation6 + $0xa0] sm:$0xff] %v1298
    %1331 = vst [vmem:[#allocation6 + $0xa8] sm:$0xff] %v1299
    %1332 = vst [vmem:[#allocation6 + $0xb0] sm:$0xff] %v1300
    %1333 = vst [vmem:[#allocation6 + $0xb8] sm:$0xff] %v1301
    %1334 = vst [vmem:[#allocation6 + $0xc0] sm:$0xff] %v1302
    %1335 = vst [vmem:[#allocation6 + $0xc8] sm:$0xff] %v1303
    %1336 = vst [vmem:[#allocation6 + $0xd0] sm:$0xff] %v1304
    %1337 = vst [vmem:[#allocation6 + $0xd8] sm:$0xff] %v1305
    %1338 = vst [vmem:[#allocation6 + $0xe0] sm:$0xff] %v1306
    %1339 = vst [vmem:[#allocation6 + $0xe8] sm:$0xff] %v1307
    %1340 = vst [vmem:[#allocation6 + $0xf0] sm:$0xff] %v1308
    %1341 = vst [vmem:[#allocation6 + $0xf8] sm:$0xff] %v1309
    // Predicated region
    $region10: #{tpu_custom_call.1} parent=1 // pred_check
      _
    $region11: #{tpu_custom_call.1} parent=1 // pred_check_branch
      %1343 = sbr.rel (0) target = $region13
    $region12: #{tpu_custom_call.1} parent=1 // pred_region
      %1345 = vsyncadd [#allocation5], 0
      %s1346 = sshll.u32 [#allocation6], 4
      %s1347 = int_to_ptr.vmem [resolvable:$true] %s1346
      %s1348 = sshll.u32 %s1, 4
      %s1349 = int_to_ptr.hbm [resolvable:$true] %s1348
      %1354 = dma.vmem_to_hbm [thread:$0]  %s1347, 4096, %s1349, [#allocation5], 128, 128, 8
    $region13: #{tpu_custom_call.1} parent=1 // pred_fallthru
      _
    // Predicated region
    $region14: #{tpu_custom_call.1} parent=1 // pred_check
      _
    $region15: #{tpu_custom_call.1} parent=1 // pred_check_branch
      %1356 = sbr.rel (0) target = $region17
    $region16: #{tpu_custom_call.1} parent=1 // pred_region
      %1358 = dma.done [#allocation5], 4096
    $region17: #{tpu_custom_call.1} parent=1 // pred_fallthru
      _
    %1359 = vsyncpa [#allocation4], 1
    %1360 = vsyncpa [#allocation5], 1

</llo_original>
